<compile_context>
chip_gen: v7x
topology: tpu7x:2x2x1
jax: 0.10.0
libtpu: 0.0.40
codegen_flags: <defaults>
</compile_context>

<pallas_src>
import functools

import jax
import jax.numpy as jnp
from jax.experimental import pallas as pl
from jax.experimental.pallas import tpu as pltpu


# ----------------------------- in-kernel helpers -----------------------------

def _mish(v):
    # mish(x) = x * tanh(softplus(x)), rewritten with a single exp:
    #   u = exp(-|x|)
    #   x >= 0: (1 + 2u) / (1 + 2u + 2u^2)
    #   x <  0: (2u + u^2) / (2 + 2u + u^2)
    u = jnp.exp(-jnp.abs(v))
    u2 = u * u
    num = jnp.where(v >= 0, 1.0 + 2.0 * u, 2.0 * u + u2)
    den = jnp.where(v >= 0, 1.0 + 2.0 * u + 2.0 * u2, 2.0 + 2.0 * u + u2)
    return v * num / den


def _conv_taps(get_tap, w_ref, b, m):
    """get_tap(k) -> [bblk, T, C_in] (bf16) tap slice; w_ref: [K, C_in, C_out] (bf16);
    b: [1, C_out] f32.  Cross-correlation (PyTorch Conv1d) -> [bblk*T, C_out] f32."""
    k_size = w_ref.shape[0]
    acc = jnp.dot(get_tap(0).reshape(m, -1), w_ref[0],
                  preferred_element_type=jnp.float32)
    for k in range(1, k_size):            # small static unroll over taps
        acc = acc + jnp.dot(get_tap(k).reshape(m, -1), w_ref[k],
                            preferred_element_type=jnp.float32)
    return acc + b


def _group_norm(h, cg, gc, gamma, beta, inv_denom, eps=1e-5):
    """h: [bblk, T, C] f32; cg: [C, G] one-hot; gc = cg.T.  One fused stats pass:
    sum and sum-of-squares share a single [2*bblk, C] @ [C,G] @ [G,C] chain."""
    bblk = h.shape[0]
    s = jnp.sum(h, axis=1)                                  # [bblk, C]
    sq = jnp.sum(h * h, axis=1)                             # [bblk, C]
    st = jnp.concatenate([s, sq], axis=0)                   # [2*bblk, C]
    gsum = jnp.dot(jnp.dot(st, cg, preferred_element_type=jnp.float32), gc,
                   preferred_element_type=jnp.float32) * inv_denom
    mean = gsum[:bblk]                                      # [bblk, C]
    var = gsum[bblk:] - mean * mean
    inv = jax.lax.rsqrt(var + eps)
    return (h - mean[:, None, :]) * inv[:, None, :] * gamma + beta


def _core(xp_ref, scale_ref, bias_ref,
          w1_ref, b1_ref, g1w_ref, g1b_ref,
          w2_ref, b2_ref, g2w_ref, g2b_ref,
          cg_ref, gc_ref, hp_ref, *, pad, t, bblk, inv_denom):
    c_out = w1_ref.shape[-1]
    m = bblk * t
    cg = cg_ref[...]
    gc = gc_ref[...]

    # --- block 0: Conv1d -> GroupNorm -> Mish (taps slice the pre-padded input) ---
    h = _conv_taps(lambda k: xp_ref[:, k:k + t, :], w1_ref, b1_ref[...], m)
    h = h.reshape(bblk, t, c_out)
    h = _mish(_group_norm(h, cg, gc, g1w_ref[...], g1b_ref[...], inv_denom))

    # --- FiLM (scale/bias precomputed in the wrapper as [bblk, 1, C] rows) ---
    h = scale_ref[...] * h + bias_ref[...]

    # --- stage block-1 input in a padded bf16 VMEM scratch (no per-step concatenate).
    #     Pad rows are re-zeroed every step (cheap, and correct for any grid sharding).
    if pad > 0:
        zpad = jnp.zeros((bblk, pad, c_out), hp_ref.dtype)
        hp_ref[:, :pad, :] = zpad
        hp_ref[:, pad + t:, :] = zpad
    hp_ref[:, pad:pad + t, :] = h.astype(hp_ref.dtype)

    # --- block 1: Conv1d -> GroupNorm -> Mish ---
    h = _conv_taps(lambda k: hp_ref[:, k:k + t, :], w2_ref, b2_ref[...], m)
    h = h.reshape(bblk, t, c_out)
    h = _mish(_group_norm(h, cg, gc, g2w_ref[...], g2b_ref[...], inv_denom))
    return h


def _kernel_identity(xp_ref, scale_ref, bias_ref,
                     w1_ref, b1_ref, g1w_ref, g1b_ref,
                     w2_ref, b2_ref, g2w_ref, g2b_ref,
                     cg_ref, gc_ref, o_ref, hp_ref, *, pad, t, bblk, inv_denom):
    h = _core(xp_ref, scale_ref, bias_ref, w1_ref, b1_ref, g1w_ref, g1b_ref,
              w2_ref, b2_ref, g2w_ref, g2b_ref, cg_ref, gc_ref, hp_ref,
              pad=pad, t=t, bblk=bblk, inv_denom=inv_denom)
    # residual_conv is nn.Identity(): plain add (re-read the slice from the ref).
    res = xp_ref[:, pad:pad + t, :].astype(jnp.float32)
    o_ref[...] = (h + res).astype(o_ref.dtype)


def _kernel_resconv(xp_ref, scale_ref, bias_ref,
                    w1_ref, b1_ref, g1w_ref, g1b_ref,
                    w2_ref, b2_ref, g2w_ref, g2b_ref,
                    cg_ref, gc_ref, wr_ref, br_ref, o_ref, hp_ref,
                    *, pad, t, bblk, inv_denom):
    h = _core(xp_ref, scale_ref, bias_ref, w1_ref, b1_ref, g1w_ref, g1b_ref,
              w2_ref, b2_ref, g2w_ref, g2b_ref, cg_ref, gc_ref, hp_ref,
              pad=pad, t=t, bblk=bblk, inv_denom=inv_denom)
    # 1x1 residual conv: re-read the input slice right before the dot.
    xs = xp_ref[:, pad:pad + t, :].reshape(bblk * t, -1)
    res = (jnp.dot(xs, wr_ref[...], preferred_element_type=jnp.float32)
           + br_ref[...]).reshape(bblk, t, -1)
    o_ref[...] = (h + res).astype(o_ref.dtype)


# --------------------------------- wrapper -----------------------------------

def conditional_residual_block_1d(x, cond, params, *, kernel_size=3, n_groups=8,
                                  batch_block=None, channels_last=False,
                                  core_parallel=False):
    f32, bf16 = jnp.float32, jnp.bfloat16
    assert kernel_size % 2 == 1

    if channels_last:
        b, t, c_in = x.shape
        x_tc = x
    else:
        b, c_in, t = x.shape
        x_tc = jnp.transpose(x, (0, 2, 1))              # channels-last [B, T, C_in]

    c_out = params["gn1_w"].shape[0]
    assert c_out % n_groups == 0
    pad = kernel_size // 2
    tp = t + 2 * pad
    inv_denom = 1.0 / float((c_out // n_groups) * t)

    # Batch block: fill the MXU M dimension (>= 256 rows) and amortise grid overhead.
    if batch_block is None:
        bblk = max(1, min(b, -(-256 // t)))
    else:
        bblk = max(1, batch_block)
    bp = -(-b // bblk) * bblk                           # batch padded to multiple of bblk

    # channels-last, batch- and time-padded bf16 matmul operand: [Bp, T+2*pad, C_in]
    xp = jnp.pad(x_tc.astype(f32),
                 ((0, bp - b), (pad, pad), (0, 0))).astype(bf16)

    # FiLM (Mish -> Linear) precomputed as one XLA matmul for the whole batch.
    c = cond.astype(f32)
    emb = (c * jnp.tanh(jax.nn.softplus(c))) @ params["cond_w"].T.astype(f32) \
        + params["cond_b"].astype(f32)
    emb = jnp.pad(emb, ((0, bp - b), (0, 0)))
    scale = emb[:, :c_out].reshape(bp, 1, c_out)
    bias = emb[:, c_out:].reshape(bp, 1, c_out)

    row = lambda v: v.reshape(1, -1).astype(f32)
    # conv weights: PyTorch [C_out, C_in, K] -> [K, C_in, C_out], bf16 (f32 accumulate).
    w1 = jnp.transpose(params["w1"], (2, 1, 0)).astype(bf16)
    w2 = jnp.transpose(params["w2"], (2, 1, 0)).astype(bf16)

    # GroupNorm one-hot group matrices (O(C*G) VMEM); kept f32 so stats stay f32-exact.
    group = jnp.arange(c_out) // (c_out // n_groups)
    cg = (group[:, None] == jnp.arange(n_groups)[None, :]).astype(f32)   # [C, G]
    gc = cg.T                                                            # [G, C]

    inputs = [
        xp, scale, bias,
        w1, row(params["b1"]), row(params["gn1_w"]), row(params["gn1_b"]),
        w2, row(params["b2"]), row(params["gn2_w"]), row(params["gn2_b"]),
        cg, gc,
    ]
    if c_in != c_out:
        inputs += [params["wr"][:, :, 0].T.astype(bf16),   # [C_in, C_out]
                   row(params["br"])]
        kern = functools.partial(_kernel_resconv, pad=pad, t=t, bblk=bblk,
                                 inv_denom=inv_denom)
    else:
        kern = functools.partial(_kernel_identity, pad=pad, t=t, bblk=bblk,
                                 inv_denom=inv_denom)

    # Constant parameters: whole-array, VMEM-resident, single-buffered (no per-step DMA,
    # half the weight VMEM of the default double-buffered pipeline -> fits v7x's 64 MiB).
    param_spec = pl.BlockSpec(memory_space=pltpu.MemorySpace.VMEM)
    in_specs = ([pl.BlockSpec((bblk, tp, c_in), lambda i: (i, 0, 0)),     # x block
                 pl.BlockSpec((bblk, 1, c_out), lambda i: (i, 0, 0)),     # FiLM scale
                 pl.BlockSpec((bblk, 1, c_out), lambda i: (i, 0, 0))]     # FiLM bias
                + [param_spec] * (len(inputs) - 3))

    # Explicit VMEM budget: params once + double-buffered activation blocks + scratch.
    out_itemsize = jnp.dtype(x.dtype).itemsize
    param_bytes = sum(int(a.size) * a.dtype.itemsize for a in inputs[3:])
    block_bytes = (bblk * tp * c_in * 2                 # xp block (bf16)
                   + 2 * bblk * c_out * 4               # FiLM scale + bias blocks (f32)
                   + bblk * t * c_out * out_itemsize)   # output block
    scratch_bytes = bblk * tp * c_out * 2               # padded h scratch (bf16)
    est = param_bytes + 2 * block_bytes + scratch_bytes
    vmem_limit = int(min(128 << 20, max(32 << 20, 2 * est)))

    # "parallel" is safe everywhere; on v7x pass core_parallel=True (2 TensorCores).
    batch_sem = pltpu.CORE_PARALLEL if core_parallel else "parallel"

    out = pl.pallas_call(
        kern,
        out_shape=jax.ShapeDtypeStruct((bp, t, c_out), x.dtype),
        grid=(bp // bblk,),
        in_specs=in_specs,
        out_specs=pl.BlockSpec((bblk, t, c_out), lambda i: (i, 0, 0)),
        scratch_shapes=[pltpu.VMEM((bblk, tp, c_out), bf16)],   # padded block-1 input
        compiler_params=pltpu.CompilerParams(
            dimension_semantics=(batch_sem,),
            vmem_limit_bytes=vmem_limit),
    )(*inputs)

    out = out[:b]                                        # drop batch padding
    if channels_last:
        return out                                       # [B, T, C_out]
    return jnp.transpose(out, (0, 2, 1))                 # PyTorch layout [B, C_out, T]


# ------------------------- pure-JAX reference (check) -------------------------

def reference_forward(x, cond, params, *, kernel_size=3, n_groups=8):
    pad = kernel_size // 2
    c_out = params["gn1_w"].shape[0]

    def conv1d(v, w, bias):
        out = jax.lax.conv_general_dilated(
            v, w, window_strides=(1,), padding=[(pad, pad)],
            dimension_numbers=("NCH", "OIH", "NCH"))
        return out + bias[None, :, None]

    def gn(v, gamma, beta, eps=1e-5):
        bsz, c, t = v.shape
        vg = v.reshape(bsz, n_groups, (c // n_groups) * t)
        m = vg.mean(-1, keepdims=True)
        var = vg.var(-1, keepdims=True)
        vg = (vg - m) / jnp.sqrt(var + eps)
        return vg.reshape(bsz, c, t) * gamma[None, :, None] + beta[None, :, None]

    def mish(v):
        return v * jnp.tanh(jax.nn.softplus(v))

    h = mish(gn(conv1d(x, params["w1"], params["b1"]),
                params["gn1_w"], params["gn1_b"]))
    emb = mish(cond) @ params["cond_w"].T + params["cond_b"]
    scale = emb[:, :c_out][:, :, None]
    bias = emb[:, c_out:][:, :, None]
    h = scale * h + bias
    h = mish(gn(conv1d(h, params["w2"], params["b2"]),
                params["gn2_w"], params["gn2_b"]))
    if x.shape[1] != c_out:
        res = jnp.einsum("oi,bit->bot", params["wr"][:, :, 0], x) \
            + params["br"][None, :, None]
    else:
        res = x
    return h + res


# ----------------------------------- main -------------------------------------

if __name__ == "__main__":
    def make_params(key, c_in, c_out, cond_dim, k):
        ks = jax.random.split(key, 12)
        f32 = jnp.float32
        s1 = (c_in * k) ** -0.5
        s2 = (c_out * k) ** -0.5
        sc = cond_dim ** -0.5
        p = {
            "w1": s1 * jax.random.normal(ks[0], (c_out, c_in, k), f32),
            "b1": 0.1 * jax.random.normal(ks[1], (c_out,), f32),
            "gn1_w": 1.0 + 0.1 * jax.random.normal(ks[2], (c_out,), f32),
            "gn1_b": 0.1 * jax.random.normal(ks[3], (c_out,), f32),
            "w2": s2 * jax.random.normal(ks[4], (c_out, c_out, k), f32),
            "b2": 0.1 * jax.random.normal(ks[5], (c_out,), f32),
            "gn2_w": 1.0 + 0.1 * jax.random.normal(ks[6], (c_out,), f32),
            "gn2_b": 0.1 * jax.random.normal(ks[7], (c_out,), f32),
            "cond_w": sc * jax.random.normal(ks[8], (2 * c_out, cond_dim), f32),
            "cond_b": 0.1 * jax.random.normal(ks[9], (2 * c_out,), f32),
        }
        if c_in != c_out:
            p["wr"] = (c_in ** -0.5) * jax.random.normal(ks[10], (c_out, c_in, 1), f32)
            p["br"] = 0.1 * jax.random.normal(ks[11], (c_out,), f32)
        return p

    def check(out, ref, name, atol=5e-2, rtol=5e-2):
        err = float(jnp.max(jnp.abs(out - ref)))
        assert bool(jnp.allclose(out, ref, atol=atol, rtol=rtol)), (name, err)

    key = jax.random.PRNGKey(0)
    k0, k1, k2, k3, k4, k5 = jax.random.split(key, 6)

    # Case 1: small, c_in != c_out (residual 1x1 conv path)
    B, T, COND_DIM, K, NG = 2, 16, 32, 3, 4
    C_IN, C_OUT = 4, 8
    params = make_params(k0, C_IN, C_OUT, COND_DIM, K)
    x = jax.random.normal(k1, (B, C_IN, T), jnp.float32)
    cond = jax.random.normal(k2, (B, COND_DIM), jnp.float32)
    out = jax.block_until_ready(
        conditional_residual_block_1d(x, cond, params, kernel_size=K, n_groups=NG))
    assert out.shape == (B, C_OUT, T), out.shape
    check(out, reference_forward(x, cond, params, kernel_size=K, n_groups=NG), "case1")

    # Case 2: small, c_in == c_out (identity residual path — plain add in the kernel)
    params2 = make_params(k3, C_OUT, C_OUT, COND_DIM, K)
    x2 = jax.random.normal(k1, (B, C_OUT, T), jnp.float32)
    out2 = jax.block_until_ready(
        conditional_residual_block_1d(x2, cond, params2, kernel_size=K, n_groups=NG))
    assert out2.shape == (B, C_OUT, T), out2.shape
    check(out2, reference_forward(x2, cond, params2, kernel_size=K, n_groups=NG), "case2")

    # Case 3: realistic layout — C multiple of 128, T multiple of 8, batch-blocked grid.
    B3, T3, CI3, CO3, NG3, CD3 = 4, 16, 128, 256, 8, 64
    params3 = make_params(k4, CI3, CO3, CD3, K)
    x3 = jax.random.normal(k5, (B3, CI3, T3), jnp.float32)
    cond3 = jax.random.normal(k2, (B3, CD3), jnp.float32)
    out3 = jax.block_until_ready(
        conditional_residual_block_1d(x3, cond3, params3, kernel_size=K, n_groups=NG3))
    ref3 = reference_forward(x3, cond3, params3, kernel_size=K, n_groups=NG3)
    assert out3.shape == (B3, CO3, T3), out3.shape
    check(out3, ref3, "case3")

    # Channels-last I/O path (avoid per-block layout transposes when chaining blocks).
    x3_cl = jnp.transpose(x3, (0, 2, 1))
    out3_cl = jax.block_until_ready(conditional_residual_block_1d(
        x3_cl, cond3, params3, kernel_size=K, n_groups=NG3, channels_last=True))
    check(jnp.transpose(out3_cl, (0, 2, 1)), ref3, "case3_channels_last")

    print("KERNEL_OK")
</pallas_src>

<mosaic_0001>
module attributes {stable_mosaic.version = 11 : i64} {
  func.func @_kernel_resconv(%arg0: i32, %arg1: memref<2x18x4xbf16, #tpu.memory_space<vmem>>, %arg2: memref<2x1x8xf32, #tpu.memory_space<vmem>>, %arg3: memref<2x1x8xf32, #tpu.memory_space<vmem>>, %arg4: memref<3x4x8xbf16, #tpu.memory_space<vmem>>, %arg5: memref<1x8xf32, #tpu.memory_space<vmem>>, %arg6: memref<1x8xf32, #tpu.memory_space<vmem>>, %arg7: memref<1x8xf32, #tpu.memory_space<vmem>>, %arg8: memref<3x8x8xbf16, #tpu.memory_space<vmem>>, %arg9: memref<1x8xf32, #tpu.memory_space<vmem>>, %arg10: memref<1x8xf32, #tpu.memory_space<vmem>>, %arg11: memref<1x8xf32, #tpu.memory_space<vmem>>, %arg12: memref<8x4xf32, #tpu.memory_space<vmem>>, %arg13: memref<4x8xf32, #tpu.memory_space<vmem>>, %arg14: memref<4x8xbf16, #tpu.memory_space<vmem>>, %arg15: memref<1x8xf32, #tpu.memory_space<vmem>>, %arg16: memref<2x16x8xf32, #tpu.memory_space<vmem>>, %arg17: memref<2x18x8xbf16, #tpu.memory_space<vmem>>) attributes {dimension_semantics = [#tpu.dimension_semantics<parallel>], iteration_bounds = array<i64: 1>, scalar_prefetch = 0 : i64, scratch_operands = 1 : i64, tpu.core_type = #tpu.core_type<tc>, window_params = [{transform_indices = @transform_0, window_bounds = array<i64: 2, 18, 4>}, {transform_indices = @transform_1, window_bounds = array<i64: 2, 1, 8>}, {transform_indices = @transform_2, window_bounds = array<i64: 2, 1, 8>}, {pipeline_mode = #tpu.pipeline_mode<synchronous>, transform_indices = @transform_3, window_bounds = array<i64: 3, 4, 8>}, {pipeline_mode = #tpu.pipeline_mode<synchronous>, transform_indices = @transform_4, window_bounds = array<i64: 1, 8>}, {pipeline_mode = #tpu.pipeline_mode<synchronous>, transform_indices = @transform_5, window_bounds = array<i64: 1, 8>}, {pipeline_mode = #tpu.pipeline_mode<synchronous>, transform_indices = @transform_6, window_bounds = array<i64: 1, 8>}, {pipeline_mode = #tpu.pipeline_mode<synchronous>, transform_indices = @transform_7, window_bounds = array<i64: 3, 8, 8>}, {pipeline_mode = #tpu.pipeline_mode<synchronous>, transform_indices = @transform_8, window_bounds = array<i64: 1, 8>}, {pipeline_mode = #tpu.pipeline_mode<synchronous>, transform_indices = @transform_9, window_bounds = array<i64: 1, 8>}, {pipeline_mode = #tpu.pipeline_mode<synchronous>, transform_indices = @transform_10, window_bounds = array<i64: 1, 8>}, {pipeline_mode = #tpu.pipeline_mode<synchronous>, transform_indices = @transform_11, window_bounds = array<i64: 8, 4>}, {pipeline_mode = #tpu.pipeline_mode<synchronous>, transform_indices = @transform_12, window_bounds = array<i64: 4, 8>}, {pipeline_mode = #tpu.pipeline_mode<synchronous>, transform_indices = @transform_13, window_bounds = array<i64: 4, 8>}, {pipeline_mode = #tpu.pipeline_mode<synchronous>, transform_indices = @transform_14, window_bounds = array<i64: 1, 8>}, {transform_indices = @transform_15, window_bounds = array<i64: 2, 16, 8>}]} {
    %c0 = arith.constant 0 : index
    %c0_0 = arith.constant 0 : index
    %0 = vector.load %arg12[%c0, %c0_0] : memref<8x4xf32, #tpu.memory_space<vmem>>, vector<8x4xf32>
    %c0_1 = arith.constant 0 : index
    %c0_2 = arith.constant 0 : index
    %1 = vector.load %arg13[%c0_1, %c0_2] : memref<4x8xf32, #tpu.memory_space<vmem>>, vector<4x8xf32>
    %c0_3 = arith.constant 0 : index
    %c0_4 = arith.constant 0 : index
    %2 = vector.load %arg5[%c0_3, %c0_4] : memref<1x8xf32, #tpu.memory_space<vmem>>, vector<1x8xf32>
    %c0_5 = arith.constant 0 : index
    %c0_6 = arith.constant 0 : index
    %c0_7 = arith.constant 0 : index
    %3 = vector.load %arg1[%c0_5, %c0_6, %c0_7] : memref<2x18x4xbf16, #tpu.memory_space<vmem>>, vector<2x16x4xbf16>
    %4 = vector.shape_cast %3 : vector<2x16x4xbf16> to vector<32x4xbf16>
    %c0_8 = arith.constant 0 : index
    %c0_9 = arith.constant 0 : index
    %c0_10 = arith.constant 0 : index
    %5 = vector.load %arg4[%c0_8, %c0_9, %c0_10] : memref<3x4x8xbf16, #tpu.memory_space<vmem>>, vector<1x4x8xbf16>
    %6 = vector.shape_cast %5 : vector<1x4x8xbf16> to vector<4x8xbf16>
    %cst = arith.constant dense<0.000000e+00> : vector<32x8xf32>
    %7 = tpu.matmul %4, %6, %cst {dimension_numbers = #tpu.dot_dimension_numbers<[1], [0], [0], [1], [0, 0, 1, 1], [], []>} : vector<32x4xbf16>, vector<4x8xbf16>, vector<32x8xf32> -> vector<32x8xf32>
    %c0_11 = arith.constant 0 : index
    %c1 = arith.constant 1 : index
    %c0_12 = arith.constant 0 : index
    %8 = vector.load %arg1[%c0_11, %c1, %c0_12] : memref<2x18x4xbf16, #tpu.memory_space<vmem>>, vector<2x16x4xbf16>
    %9 = vector.shape_cast %8 : vector<2x16x4xbf16> to vector<32x4xbf16>
    %c1_13 = arith.constant 1 : index
    %c0_14 = arith.constant 0 : index
    %c0_15 = arith.constant 0 : index
    %10 = vector.load %arg4[%c1_13, %c0_14, %c0_15] : memref<3x4x8xbf16, #tpu.memory_space<vmem>>, vector<1x4x8xbf16>
    %11 = vector.shape_cast %10 : vector<1x4x8xbf16> to vector<4x8xbf16>
    %cst_16 = arith.constant dense<0.000000e+00> : vector<32x8xf32>
    %12 = tpu.matmul %9, %11, %cst_16 {dimension_numbers = #tpu.dot_dimension_numbers<[1], [0], [0], [1], [0, 0, 1, 1], [], []>} : vector<32x4xbf16>, vector<4x8xbf16>, vector<32x8xf32> -> vector<32x8xf32>
    %13 = arith.addf %7, %12 : vector<32x8xf32>
    %c0_17 = arith.constant 0 : index
    %c2 = arith.constant 2 : index
    %c0_18 = arith.constant 0 : index
    %14 = vector.load %arg1[%c0_17, %c2, %c0_18] : memref<2x18x4xbf16, #tpu.memory_space<vmem>>, vector<2x16x4xbf16>
    %15 = vector.shape_cast %14 : vector<2x16x4xbf16> to vector<32x4xbf16>
    %c2_19 = arith.constant 2 : index
    %c0_20 = arith.constant 0 : index
    %c0_21 = arith.constant 0 : index
    %16 = vector.load %arg4[%c2_19, %c0_20, %c0_21] : memref<3x4x8xbf16, #tpu.memory_space<vmem>>, vector<1x4x8xbf16>
    %17 = vector.shape_cast %16 : vector<1x4x8xbf16> to vector<4x8xbf16>
    %cst_22 = arith.constant dense<0.000000e+00> : vector<32x8xf32>
    %18 = tpu.matmul %15, %17, %cst_22 {dimension_numbers = #tpu.dot_dimension_numbers<[1], [0], [0], [1], [0, 0, 1, 1], [], []>} : vector<32x4xbf16>, vector<4x8xbf16>, vector<32x8xf32> -> vector<32x8xf32>
    %19 = arith.addf %13, %18 : vector<32x8xf32>
    %20 = vector.broadcast %2 : vector<1x8xf32> to vector<32x8xf32>
    %21 = arith.addf %19, %20 : vector<32x8xf32>
    %22 = vector.shape_cast %21 : vector<32x8xf32> to vector<2x16x8xf32>
    %c0_23 = arith.constant 0 : index
    %c0_24 = arith.constant 0 : index
    %23 = vector.load %arg6[%c0_23, %c0_24] : memref<1x8xf32, #tpu.memory_space<vmem>>, vector<1x8xf32>
    %c0_25 = arith.constant 0 : index
    %c0_26 = arith.constant 0 : index
    %24 = vector.load %arg7[%c0_25, %c0_26] : memref<1x8xf32, #tpu.memory_space<vmem>>, vector<1x8xf32>
    %cst_27 = arith.constant dense<0.000000e+00> : vector<2x8xf32>
    %25 = vector.multi_reduction <add>, %22, %cst_27 [1] : vector<2x16x8xf32> to vector<2x8xf32>
    %26 = arith.mulf %22, %22 : vector<2x16x8xf32>
    %cst_28 = arith.constant dense<0.000000e+00> : vector<2x8xf32>
    %27 = vector.multi_reduction <add>, %26, %cst_28 [1] : vector<2x16x8xf32> to vector<2x8xf32>
    %28 = tpu.concatenate %25, %27 in 0 : vector<2x8xf32>, vector<2x8xf32> -> vector<4x8xf32>
    %cst_29 = arith.constant dense<0.000000e+00> : vector<4x4xf32>
    %29 = tpu.matmul %28, %0, %cst_29 {dimension_numbers = #tpu.dot_dimension_numbers<[1], [0], [0], [1], [0, 0, 1, 1], [], []>} : vector<4x8xf32>, vector<8x4xf32>, vector<4x4xf32> -> vector<4x4xf32>
    %cst_30 = arith.constant dense<0.000000e+00> : vector<4x8xf32>
    %30 = tpu.matmul %29, %1, %cst_30 {dimension_numbers = #tpu.dot_dimension_numbers<[1], [0], [0], [1], [0, 0, 1, 1], [], []>} : vector<4x4xf32>, vector<4x8xf32>, vector<4x8xf32> -> vector<4x8xf32>
    %cst_31 = arith.constant 3.125000e-02 : f32
    %31 = vector.broadcast %cst_31 : f32 to vector<4x8xf32>
    %32 = arith.mulf %30, %31 : vector<4x8xf32>
    %33 = vector.extract_strided_slice %32 {offsets = [0, 0], sizes = [2, 8], strides = [1, 1]} : vector<4x8xf32> to vector<2x8xf32>
    %34 = vector.extract_strided_slice %32 {offsets = [2, 0], sizes = [2, 8], strides = [1, 1]} : vector<4x8xf32> to vector<2x8xf32>
    %35 = arith.mulf %33, %33 : vector<2x8xf32>
    %36 = arith.subf %34, %35 : vector<2x8xf32>
    %cst_32 = arith.constant 9.99999974E-6 : f32
    %37 = vector.broadcast %cst_32 : f32 to vector<2x8xf32>
    %38 = arith.addf %36, %37 : vector<2x8xf32>
    %39 = math.rsqrt %38 : vector<2x8xf32>
    %40 = vector.shape_cast %33 : vector<2x8xf32> to vector<2x1x8xf32>
    %41 = vector.broadcast %40 : vector<2x1x8xf32> to vector<2x16x8xf32>
    %42 = arith.subf %22, %41 : vector<2x16x8xf32>
    %43 = vector.shape_cast %39 : vector<2x8xf32> to vector<2x1x8xf32>
    %44 = vector.broadcast %43 : vector<2x1x8xf32> to vector<2x16x8xf32>
    %45 = arith.mulf %42, %44 : vector<2x16x8xf32>
    %46 = vector.shape_cast %23 : vector<1x8xf32> to vector<1x1x8xf32>
    %47 = vector.broadcast %46 : vector<1x1x8xf32> to vector<2x16x8xf32>
    %48 = arith.mulf %45, %47 : vector<2x16x8xf32>
    %49 = vector.shape_cast %24 : vector<1x8xf32> to vector<1x1x8xf32>
    %50 = vector.broadcast %49 : vector<1x1x8xf32> to vector<2x16x8xf32>
    %51 = arith.addf %48, %50 : vector<2x16x8xf32>
    %52 = math.absf %51 : vector<2x16x8xf32>
    %cst_33 = arith.constant 0.000000e+00 : f32
    %53 = vector.broadcast %cst_33 : f32 to vector<2x16x8xf32>
    %54 = arith.subf %53, %52 : vector<2x16x8xf32>
    %55 = math.exp %54 : vector<2x16x8xf32>
    %56 = arith.mulf %55, %55 : vector<2x16x8xf32>
    %cst_34 = arith.constant 0.000000e+00 : f32
    %57 = vector.broadcast %cst_34 : f32 to vector<2x16x8xf32>
    %58 = arith.cmpf oge, %51, %57 : vector<2x16x8xf32>
    %cst_35 = arith.constant 2.000000e+00 : f32
    %59 = vector.broadcast %cst_35 : f32 to vector<2x16x8xf32>
    %60 = arith.mulf %59, %55 : vector<2x16x8xf32>
    %cst_36 = arith.constant 1.000000e+00 : f32
    %61 = vector.broadcast %cst_36 : f32 to vector<2x16x8xf32>
    %62 = arith.addf %61, %60 : vector<2x16x8xf32>
    %cst_37 = arith.constant 2.000000e+00 : f32
    %63 = vector.broadcast %cst_37 : f32 to vector<2x16x8xf32>
    %64 = arith.mulf %63, %55 : vector<2x16x8xf32>
    %65 = arith.addf %64, %56 : vector<2x16x8xf32>
    %66 = arith.select %58, %62, %65 : vector<2x16x8xi1>, vector<2x16x8xf32>
    %cst_38 = arith.constant 0.000000e+00 : f32
    %67 = vector.broadcast %cst_38 : f32 to vector<2x16x8xf32>
    %68 = arith.cmpf oge, %51, %67 : vector<2x16x8xf32>
    %cst_39 = arith.constant 2.000000e+00 : f32
    %69 = vector.broadcast %cst_39 : f32 to vector<2x16x8xf32>
    %70 = arith.mulf %69, %55 : vector<2x16x8xf32>
    %cst_40 = arith.constant 1.000000e+00 : f32
    %71 = vector.broadcast %cst_40 : f32 to vector<2x16x8xf32>
    %72 = arith.addf %71, %70 : vector<2x16x8xf32>
    %cst_41 = arith.constant 2.000000e+00 : f32
    %73 = vector.broadcast %cst_41 : f32 to vector<2x16x8xf32>
    %74 = arith.mulf %73, %56 : vector<2x16x8xf32>
    %75 = arith.addf %72, %74 : vector<2x16x8xf32>
    %cst_42 = arith.constant 2.000000e+00 : f32
    %76 = vector.broadcast %cst_42 : f32 to vector<2x16x8xf32>
    %77 = arith.mulf %76, %55 : vector<2x16x8xf32>
    %cst_43 = arith.constant 2.000000e+00 : f32
    %78 = vector.broadcast %cst_43 : f32 to vector<2x16x8xf32>
    %79 = arith.addf %78, %77 : vector<2x16x8xf32>
    %80 = arith.addf %79, %56 : vector<2x16x8xf32>
    %81 = arith.select %68, %75, %80 : vector<2x16x8xi1>, vector<2x16x8xf32>
    %82 = arith.mulf %51, %66 : vector<2x16x8xf32>
    %83 = arith.divf %82, %81 : vector<2x16x8xf32>
    %c0_44 = arith.constant 0 : index
    %c0_45 = arith.constant 0 : index
    %c0_46 = arith.constant 0 : index
    %84 = vector.load %arg2[%c0_44, %c0_45, %c0_46] : memref<2x1x8xf32, #tpu.memory_space<vmem>>, vector<2x1x8xf32>
    %85 = vector.broadcast %84 : vector<2x1x8xf32> to vector<2x16x8xf32>
    %86 = arith.mulf %85, %83 : vector<2x16x8xf32>
    %c0_47 = arith.constant 0 : index
    %c0_48 = arith.constant 0 : index
    %c0_49 = arith.constant 0 : index
    %87 = vector.load %arg3[%c0_47, %c0_48, %c0_49] : memref<2x1x8xf32, #tpu.memory_space<vmem>>, vector<2x1x8xf32>
    %88 = vector.broadcast %87 : vector<2x1x8xf32> to vector<2x16x8xf32>
    %89 = arith.addf %86, %88 : vector<2x16x8xf32>
    %cst_50 = arith.constant 0.000000e+00 : bf16
    %90 = vector.broadcast %cst_50 : bf16 to vector<2x1x8xbf16>
    %c0_51 = arith.constant 0 : index
    %c0_52 = arith.constant 0 : index
    %c0_53 = arith.constant 0 : index
    %91 = vector.load %arg17[%c0_51, %c0_52, %c0_53] : memref<2x18x8xbf16, #tpu.memory_space<vmem>>, vector<2x1x8xbf16>
    tpu.vector_store %arg17[%c0_51, %c0_52, %c0_53], %90 {strides = array<i32>} : memref<2x18x8xbf16, #tpu.memory_space<vmem>>, vector<2x1x8xbf16>,
    %c0_54 = arith.constant 0 : index
    %c17 = arith.constant 17 : index
    %c0_55 = arith.constant 0 : index
    %92 = vector.load %arg17[%c0_54, %c17, %c0_55] : memref<2x18x8xbf16, #tpu.memory_space<vmem>>, vector<2x1x8xbf16>
    tpu.vector_store %arg17[%c0_54, %c17, %c0_55], %90 {strides = array<i32>} : memref<2x18x8xbf16, #tpu.memory_space<vmem>>, vector<2x1x8xbf16>,
    %93 = arith.truncf %89 : vector<2x16x8xf32> to vector<2x16x8xbf16>
    %c0_56 = arith.constant 0 : index
    %c1_57 = arith.constant 1 : index
    %c0_58 = arith.constant 0 : index
    %94 = vector.load %arg17[%c0_56, %c1_57, %c0_58] : memref<2x18x8xbf16, #tpu.memory_space<vmem>>, vector<2x16x8xbf16>
    tpu.vector_store %arg17[%c0_56, %c1_57, %c0_58], %93 {strides = array<i32>} : memref<2x18x8xbf16, #tpu.memory_space<vmem>>, vector<2x16x8xbf16>,
    %c0_59 = arith.constant 0 : index
    %c0_60 = arith.constant 0 : index
    %95 = vector.load %arg9[%c0_59, %c0_60] : memref<1x8xf32, #tpu.memory_space<vmem>>, vector<1x8xf32>
    %c0_61 = arith.constant 0 : index
    %c0_62 = arith.constant 0 : index
    %c0_63 = arith.constant 0 : index
    %96 = vector.load %arg17[%c0_61, %c0_62, %c0_63] : memref<2x18x8xbf16, #tpu.memory_space<vmem>>, vector<2x16x8xbf16>
    %97 = vector.shape_cast %96 : vector<2x16x8xbf16> to vector<32x8xbf16>
    %c0_64 = arith.constant 0 : index
    %c0_65 = arith.constant 0 : index
    %c0_66 = arith.constant 0 : index
    %98 = vector.load %arg8[%c0_64, %c0_65, %c0_66] : memref<3x8x8xbf16, #tpu.memory_space<vmem>>, vector<1x8x8xbf16>
    %99 = vector.shape_cast %98 : vector<1x8x8xbf16> to vector<8x8xbf16>
    %cst_67 = arith.constant dense<0.000000e+00> : vector<32x8xf32>
    %100 = tpu.matmul %97, %99, %cst_67 {dimension_numbers = #tpu.dot_dimension_numbers<[1], [0], [0], [1], [0, 0, 1, 1], [], []>} : vector<32x8xbf16>, vector<8x8xbf16>, vector<32x8xf32> -> vector<32x8xf32>
    %c0_68 = arith.constant 0 : index
    %c1_69 = arith.constant 1 : index
    %c0_70 = arith.constant 0 : index
    %101 = vector.load %arg17[%c0_68, %c1_69, %c0_70] : memref<2x18x8xbf16, #tpu.memory_space<vmem>>, vector<2x16x8xbf16>
    %102 = vector.shape_cast %101 : vector<2x16x8xbf16> to vector<32x8xbf16>
    %c1_71 = arith.constant 1 : index
    %c0_72 = arith.constant 0 : index
    %c0_73 = arith.constant 0 : index
    %103 = vector.load %arg8[%c1_71, %c0_72, %c0_73] : memref<3x8x8xbf16, #tpu.memory_space<vmem>>, vector<1x8x8xbf16>
    %104 = vector.shape_cast %103 : vector<1x8x8xbf16> to vector<8x8xbf16>
    %cst_74 = arith.constant dense<0.000000e+00> : vector<32x8xf32>
    %105 = tpu.matmul %102, %104, %cst_74 {dimension_numbers = #tpu.dot_dimension_numbers<[1], [0], [0], [1], [0, 0, 1, 1], [], []>} : vector<32x8xbf16>, vector<8x8xbf16>, vector<32x8xf32> -> vector<32x8xf32>
    %106 = arith.addf %100, %105 : vector<32x8xf32>
    %c0_75 = arith.constant 0 : index
    %c2_76 = arith.constant 2 : index
    %c0_77 = arith.constant 0 : index
    %107 = vector.load %arg17[%c0_75, %c2_76, %c0_77] : memref<2x18x8xbf16, #tpu.memory_space<vmem>>, vector<2x16x8xbf16>
    %108 = vector.shape_cast %107 : vector<2x16x8xbf16> to vector<32x8xbf16>
    %c2_78 = arith.constant 2 : index
    %c0_79 = arith.constant 0 : index
    %c0_80 = arith.constant 0 : index
    %109 = vector.load %arg8[%c2_78, %c0_79, %c0_80] : memref<3x8x8xbf16, #tpu.memory_space<vmem>>, vector<1x8x8xbf16>
    %110 = vector.shape_cast %109 : vector<1x8x8xbf16> to vector<8x8xbf16>
    %cst_81 = arith.constant dense<0.000000e+00> : vector<32x8xf32>
    %111 = tpu.matmul %108, %110, %cst_81 {dimension_numbers = #tpu.dot_dimension_numbers<[1], [0], [0], [1], [0, 0, 1, 1], [], []>} : vector<32x8xbf16>, vector<8x8xbf16>, vector<32x8xf32> -> vector<32x8xf32>
    %112 = arith.addf %106, %111 : vector<32x8xf32>
    %113 = vector.broadcast %95 : vector<1x8xf32> to vector<32x8xf32>
    %114 = arith.addf %112, %113 : vector<32x8xf32>
    %115 = vector.shape_cast %114 : vector<32x8xf32> to vector<2x16x8xf32>
    %c0_82 = arith.constant 0 : index
    %c0_83 = arith.constant 0 : index
    %116 = vector.load %arg10[%c0_82, %c0_83] : memref<1x8xf32, #tpu.memory_space<vmem>>, vector<1x8xf32>
    %c0_84 = arith.constant 0 : index
    %c0_85 = arith.constant 0 : index
    %117 = vector.load %arg11[%c0_84, %c0_85] : memref<1x8xf32, #tpu.memory_space<vmem>>, vector<1x8xf32>
    %cst_86 = arith.constant dense<0.000000e+00> : vector<2x8xf32>
    %118 = vector.multi_reduction <add>, %115, %cst_86 [1] : vector<2x16x8xf32> to vector<2x8xf32>
    %119 = arith.mulf %115, %115 : vector<2x16x8xf32>
    %cst_87 = arith.constant dense<0.000000e+00> : vector<2x8xf32>
    %120 = vector.multi_reduction <add>, %119, %cst_87 [1] : vector<2x16x8xf32> to vector<2x8xf32>
    %121 = tpu.concatenate %118, %120 in 0 : vector<2x8xf32>, vector<2x8xf32> -> vector<4x8xf32>
    %cst_88 = arith.constant dense<0.000000e+00> : vector<4x4xf32>
    %122 = tpu.matmul %121, %0, %cst_88 {dimension_numbers = #tpu.dot_dimension_numbers<[1], [0], [0], [1], [0, 0, 1, 1], [], []>} : vector<4x8xf32>, vector<8x4xf32>, vector<4x4xf32> -> vector<4x4xf32>
    %cst_89 = arith.constant dense<0.000000e+00> : vector<4x8xf32>
    %123 = tpu.matmul %122, %1, %cst_89 {dimension_numbers = #tpu.dot_dimension_numbers<[1], [0], [0], [1], [0, 0, 1, 1], [], []>} : vector<4x4xf32>, vector<4x8xf32>, vector<4x8xf32> -> vector<4x8xf32>
    %cst_90 = arith.constant 3.125000e-02 : f32
    %124 = vector.broadcast %cst_90 : f32 to vector<4x8xf32>
    %125 = arith.mulf %123, %124 : vector<4x8xf32>
    %126 = vector.extract_strided_slice %125 {offsets = [0, 0], sizes = [2, 8], strides = [1, 1]} : vector<4x8xf32> to vector<2x8xf32>
    %127 = vector.extract_strided_slice %125 {offsets = [2, 0], sizes = [2, 8], strides = [1, 1]} : vector<4x8xf32> to vector<2x8xf32>
    %128 = arith.mulf %126, %126 : vector<2x8xf32>
    %129 = arith.subf %127, %128 : vector<2x8xf32>
    %cst_91 = arith.constant 9.99999974E-6 : f32
    %130 = vector.broadcast %cst_91 : f32 to vector<2x8xf32>
    %131 = arith.addf %129, %130 : vector<2x8xf32>
    %132 = math.rsqrt %131 : vector<2x8xf32>
    %133 = vector.shape_cast %126 : vector<2x8xf32> to vector<2x1x8xf32>
    %134 = vector.broadcast %133 : vector<2x1x8xf32> to vector<2x16x8xf32>
    %135 = arith.subf %115, %134 : vector<2x16x8xf32>
    %136 = vector.shape_cast %132 : vector<2x8xf32> to vector<2x1x8xf32>
    %137 = vector.broadcast %136 : vector<2x1x8xf32> to vector<2x16x8xf32>
    %138 = arith.mulf %135, %137 : vector<2x16x8xf32>
    %139 = vector.shape_cast %116 : vector<1x8xf32> to vector<1x1x8xf32>
    %140 = vector.broadcast %139 : vector<1x1x8xf32> to vector<2x16x8xf32>
    %141 = arith.mulf %138, %140 : vector<2x16x8xf32>
    %142 = vector.shape_cast %117 : vector<1x8xf32> to vector<1x1x8xf32>
    %143 = vector.broadcast %142 : vector<1x1x8xf32> to vector<2x16x8xf32>
    %144 = arith.addf %141, %143 : vector<2x16x8xf32>
    %145 = math.absf %144 : vector<2x16x8xf32>
    %cst_92 = arith.constant 0.000000e+00 : f32
    %146 = vector.broadcast %cst_92 : f32 to vector<2x16x8xf32>
    %147 = arith.subf %146, %145 : vector<2x16x8xf32>
    %148 = math.exp %147 : vector<2x16x8xf32>
    %149 = arith.mulf %148, %148 : vector<2x16x8xf32>
    %cst_93 = arith.constant 0.000000e+00 : f32
    %150 = vector.broadcast %cst_93 : f32 to vector<2x16x8xf32>
    %151 = arith.cmpf oge, %144, %150 : vector<2x16x8xf32>
    %cst_94 = arith.constant 2.000000e+00 : f32
    %152 = vector.broadcast %cst_94 : f32 to vector<2x16x8xf32>
    %153 = arith.mulf %152, %148 : vector<2x16x8xf32>
    %cst_95 = arith.constant 1.000000e+00 : f32
    %154 = vector.broadcast %cst_95 : f32 to vector<2x16x8xf32>
    %155 = arith.addf %154, %153 : vector<2x16x8xf32>
    %cst_96 = arith.constant 2.000000e+00 : f32
    %156 = vector.broadcast %cst_96 : f32 to vector<2x16x8xf32>
    %157 = arith.mulf %156, %148 : vector<2x16x8xf32>
    %158 = arith.addf %157, %149 : vector<2x16x8xf32>
    %159 = arith.select %151, %155, %158 : vector<2x16x8xi1>, vector<2x16x8xf32>
    %cst_97 = arith.constant 0.000000e+00 : f32
    %160 = vector.broadcast %cst_97 : f32 to vector<2x16x8xf32>
    %161 = arith.cmpf oge, %144, %160 : vector<2x16x8xf32>
    %cst_98 = arith.constant 2.000000e+00 : f32
    %162 = vector.broadcast %cst_98 : f32 to vector<2x16x8xf32>
    %163 = arith.mulf %162, %148 : vector<2x16x8xf32>
    %cst_99 = arith.constant 1.000000e+00 : f32
    %164 = vector.broadcast %cst_99 : f32 to vector<2x16x8xf32>
    %165 = arith.addf %164, %163 : vector<2x16x8xf32>
    %cst_100 = arith.constant 2.000000e+00 : f32
    %166 = vector.broadcast %cst_100 : f32 to vector<2x16x8xf32>
    %167 = arith.mulf %166, %149 : vector<2x16x8xf32>
    %168 = arith.addf %165, %167 : vector<2x16x8xf32>
    %cst_101 = arith.constant 2.000000e+00 : f32
    %169 = vector.broadcast %cst_101 : f32 to vector<2x16x8xf32>
    %170 = arith.mulf %169, %148 : vector<2x16x8xf32>
    %cst_102 = arith.constant 2.000000e+00 : f32
    %171 = vector.broadcast %cst_102 : f32 to vector<2x16x8xf32>
    %172 = arith.addf %171, %170 : vector<2x16x8xf32>
    %173 = arith.addf %172, %149 : vector<2x16x8xf32>
    %174 = arith.select %161, %168, %173 : vector<2x16x8xi1>, vector<2x16x8xf32>
    %175 = arith.mulf %144, %159 : vector<2x16x8xf32>
    %176 = arith.divf %175, %174 : vector<2x16x8xf32>
    %c0_103 = arith.constant 0 : index
    %c1_104 = arith.constant 1 : index
    %c0_105 = arith.constant 0 : index
    %177 = vector.load %arg1[%c0_103, %c1_104, %c0_105] : memref<2x18x4xbf16, #tpu.memory_space<vmem>>, vector<2x16x4xbf16>
    %178 = vector.shape_cast %177 : vector<2x16x4xbf16> to vector<32x4xbf16>
    %c0_106 = arith.constant 0 : index
    %c0_107 = arith.constant 0 : index
    %179 = vector.load %arg14[%c0_106, %c0_107] : memref<4x8xbf16, #tpu.memory_space<vmem>>, vector<4x8xbf16>
    %cst_108 = arith.constant dense<0.000000e+00> : vector<32x8xf32>
    %180 = tpu.matmul %178, %179, %cst_108 {dimension_numbers = #tpu.dot_dimension_numbers<[1], [0], [0], [1], [0, 0, 1, 1], [], []>} : vector<32x4xbf16>, vector<4x8xbf16>, vector<32x8xf32> -> vector<32x8xf32>
    %c0_109 = arith.constant 0 : index
    %c0_110 = arith.constant 0 : index
    %181 = vector.load %arg15[%c0_109, %c0_110] : memref<1x8xf32, #tpu.memory_space<vmem>>, vector<1x8xf32>
    %182 = vector.broadcast %181 : vector<1x8xf32> to vector<32x8xf32>
    %183 = arith.addf %180, %182 : vector<32x8xf32>
    %184 = vector.shape_cast %183 : vector<32x8xf32> to vector<2x16x8xf32>
    %185 = arith.addf %176, %184 : vector<2x16x8xf32>
    %c0_111 = arith.constant 0 : index
    %c0_112 = arith.constant 0 : index
    %c0_113 = arith.constant 0 : index
    %186 = vector.load %arg16[%c0_111, %c0_112, %c0_113] : memref<2x16x8xf32, #tpu.memory_space<vmem>>, vector<2x16x8xf32>
    tpu.vector_store %arg16[%c0_111, %c0_112, %c0_113], %185 {strides = array<i32>} : memref<2x16x8xf32, #tpu.memory_space<vmem>>, vector<2x16x8xf32>,
    return
  }
  func.func @transform_0(%arg0: i32) -> (i32, i32, i32) {
    %c0_i32 = arith.constant 0 : i32
    %c0_i32_0 = arith.constant 0 : i32
    %c0_i32_1 = arith.constant 0 : i32
    return %arg0, %c0_i32, %c0_i32_0 : i32, i32, i32
  }
  func.func @transform_1(%arg0: i32) -> (i32, i32, i32) {
    %c0_i32 = arith.constant 0 : i32
    %c0_i32_0 = arith.constant 0 : i32
    %c0_i32_1 = arith.constant 0 : i32
    return %arg0, %c0_i32, %c0_i32_0 : i32, i32, i32
  }
  func.func @transform_2(%arg0: i32) -> (i32, i32, i32) {
    %c0_i32 = arith.constant 0 : i32
    %c0_i32_0 = arith.constant 0 : i32
    %c0_i32_1 = arith.constant 0 : i32
    return %arg0, %c0_i32, %c0_i32_0 : i32, i32, i32
  }
  func.func @transform_3(%arg0: i32) -> (i32, i32, i32) {
    %c0_i32 = arith.constant 0 : i32
    %c0_i32_0 = arith.constant 0 : i32
    %c0_i32_1 = arith.constant 0 : i32
    %c0_i32_2 = arith.constant 0 : i32
    return %c0_i32, %c0_i32_0, %c0_i32_1 : i32, i32, i32
  }
  func.func @transform_4(%arg0: i32) -> (i32, i32) {
    %c0_i32 = arith.constant 0 : i32
    %c0_i32_0 = arith.constant 0 : i32
    %c0_i32_1 = arith.constant 0 : i32
    return %c0_i32, %c0_i32_0 : i32, i32
  }
  func.func @transform_5(%arg0: i32) -> (i32, i32) {
    %c0_i32 = arith.constant 0 : i32
    %c0_i32_0 = arith.constant 0 : i32
    %c0_i32_1 = arith.constant 0 : i32
    return %c0_i32, %c0_i32_0 : i32, i32
  }
  func.func @transform_6(%arg0: i32) -> (i32, i32) {
    %c0_i32 = arith.constant 0 : i32
    %c0_i32_0 = arith.constant 0 : i32
    %c0_i32_1 = arith.constant 0 : i32
    return %c0_i32, %c0_i32_0 : i32, i32
  }
  func.func @transform_7(%arg0: i32) -> (i32, i32, i32) {
    %c0_i32 = arith.constant 0 : i32
    %c0_i32_0 = arith.constant 0 : i32
    %c0_i32_1 = arith.constant 0 : i32
    %c0_i32_2 = arith.constant 0 : i32
    return %c0_i32, %c0_i32_0, %c0_i32_1 : i32, i32, i32
  }
  func.func @transform_8(%arg0: i32) -> (i32, i32) {
    %c0_i32 = arith.constant 0 : i32
    %c0_i32_0 = arith.constant 0 : i32
    %c0_i32_1 = arith.constant 0 : i32
    return %c0_i32, %c0_i32_0 : i32, i32
  }
  func.func @transform_9(%arg0: i32) -> (i32, i32) {
    %c0_i32 = arith.constant 0 : i32
    %c0_i32_0 = arith.constant 0 : i32
    %c0_i32_1 = arith.constant 0 : i32
    return %c0_i32, %c0_i32_0 : i32, i32
  }
  func.func @transform_10(%arg0: i32) -> (i32, i32) {
    %c0_i32 = arith.constant 0 : i32
    %c0_i32_0 = arith.constant 0 : i32
    %c0_i32_1 = arith.constant 0 : i32
    return %c0_i32, %c0_i32_0 : i32, i32
  }
  func.func @transform_11(%arg0: i32) -> (i32, i32) {
    %c0_i32 = arith.constant 0 : i32
    %c0_i32_0 = arith.constant 0 : i32
    %c0_i32_1 = arith.constant 0 : i32
    return %c0_i32, %c0_i32_0 : i32, i32
  }
  func.func @transform_12(%arg0: i32) -> (i32, i32) {
    %c0_i32 = arith.constant 0 : i32
    %c0_i32_0 = arith.constant 0 : i32
    %c0_i32_1 = arith.constant 0 : i32
    return %c0_i32, %c0_i32_0 : i32, i32
  }
  func.func @transform_13(%arg0: i32) -> (i32, i32) {
    %c0_i32 = arith.constant 0 : i32
    %c0_i32_0 = arith.constant 0 : i32
    %c0_i32_1 = arith.constant 0 : i32
    return %c0_i32, %c0_i32_0 : i32, i32
  }
  func.func @transform_14(%arg0: i32) -> (i32, i32) {
    %c0_i32 = arith.constant 0 : i32
    %c0_i32_0 = arith.constant 0 : i32
    %c0_i32_1 = arith.constant 0 : i32
    return %c0_i32, %c0_i32_0 : i32, i32
  }
  func.func @transform_15(%arg0: i32) -> (i32, i32, i32) {
    %c0_i32 = arith.constant 0 : i32
    %c0_i32_0 = arith.constant 0 : i32
    %c0_i32_1 = arith.constant 0 : i32
    return %arg0, %c0_i32, %c0_i32_0 : i32, i32, i32
  }
}

</mosaic_0001>

<llo_original>
// kernel: tpu_custom_call.1
$region0: #{tpu_custom_call.1}
  #allocation0 [shape = 'u32[]', space=smem, size = 0x4, offset = 0x4, fixed_abs, tag = 'smem constant byte address 0x4 - core index']
  #allocation1 [shape = 'u32[144,128]{1,0:T(1,128)}', space=vmem, size = 0x12000, scoped, tag = 'internal scratch']
  #allocation2 [shape = 'bf16[2,18,8]{2,1,0:T(8,128)(2,1)}', space=vmem, size = 0x3000, scoped, tag = 'scratch operand']
  %s0 = inlined_call_operand.vmem [shape: bf16[2,18,4], index: 0, kind: input, shape index: {}]
  %s1 = inlined_call_operand.vmem [shape: f32[2,1,8], index: 1, kind: input, shape index: {}]
  %s2 = inlined_call_operand.vmem [shape: f32[2,1,8], index: 2, kind: input, shape index: {}]
  %s3 = inlined_call_operand.vmem [shape: bf16[3,4,8], index: 3, kind: input, shape index: {}]
  %s4 = inlined_call_operand.vmem [shape: f32[1,8], index: 4, kind: input, shape index: {}]
  %s5 = inlined_call_operand.vmem [shape: f32[1,8], index: 5, kind: input, shape index: {}]
  %s6 = inlined_call_operand.vmem [shape: f32[1,8], index: 6, kind: input, shape index: {}]
  %s7 = inlined_call_operand.vmem [shape: bf16[3,8,8], index: 7, kind: input, shape index: {}]
  %s8 = inlined_call_operand.vmem [shape: f32[1,8], index: 8, kind: input, shape index: {}]
  %s9 = inlined_call_operand.vmem [shape: f32[1,8], index: 9, kind: input, shape index: {}]
  %s10 = inlined_call_operand.vmem [shape: f32[1,8], index: 10, kind: input, shape index: {}]
  %s11 = inlined_call_operand.vmem [shape: f32[8,4], index: 11, kind: input, shape index: {}]
  %s12 = inlined_call_operand.vmem [shape: f32[4,8], index: 12, kind: input, shape index: {}]
  %s13 = inlined_call_operand.vmem [shape: bf16[4,8], index: 13, kind: input, shape index: {}]
  %s14 = inlined_call_operand.vmem [shape: f32[1,8], index: 14, kind: input, shape index: {}]
  %s15 = inlined_call_operand.vmem [shape: f32[2,16,8], index: 15, kind: output, shape index: {}]
  %s16 = sld [smem:[#allocation0]]
  $region70: #{tpu_custom_call.1} parent=0
    _
  %s18 = ssub.s32 1, %s16
  %s19 = scalar_select 0, %s18, %s16
  // Predicated region
  $region2: #{tpu_custom_call.1} parent=0 // pred_check
    _
  $region3: #{tpu_custom_call.1} parent=0 // pred_check_branch
    %21 = sbr.rel (0) target = $region5
  $region4: #{tpu_custom_call.1} parent=0 // pred_region
    _
  $region5: #{tpu_custom_call.1} parent=0 // pred_fallthru
    _
  // Predicated region
  $region6: #{tpu_custom_call.1} parent=0 // pred_check
    _
  $region7: #{tpu_custom_call.1} parent=0 // pred_check_branch
    %23 = sbr.rel (0) target = $region9
  $region8: #{tpu_custom_call.1} parent=0 // pred_region
    _
  $region9: #{tpu_custom_call.1} parent=0 // pred_fallthru
    _
  // Predicated region
  $region10: #{tpu_custom_call.1} parent=0 // pred_check
    _
  $region11: #{tpu_custom_call.1} parent=0 // pred_check_branch
    %25 = sbr.rel (0) target = $region13
  $region12: #{tpu_custom_call.1} parent=0 // pred_region
    _
  $region13: #{tpu_custom_call.1} parent=0 // pred_fallthru
    _
  // Predicated region
  $region14: #{tpu_custom_call.1} parent=0 // pred_check
    _
  $region15: #{tpu_custom_call.1} parent=0 // pred_check_branch
    %27 = sbr.rel (0) target = $region17
  $region16: #{tpu_custom_call.1} parent=0 // pred_region
    _
  $region17: #{tpu_custom_call.1} parent=0 // pred_fallthru
    _
  // Predicated region
  $region18: #{tpu_custom_call.1} parent=0 // pred_check
    _
  $region19: #{tpu_custom_call.1} parent=0 // pred_check_branch
    %29 = sbr.rel (0) target = $region21
  $region20: #{tpu_custom_call.1} parent=0 // pred_region
    _
  $region21: #{tpu_custom_call.1} parent=0 // pred_fallthru
    _
  // Predicated region
  $region22: #{tpu_custom_call.1} parent=0 // pred_check
    _
  $region23: #{tpu_custom_call.1} parent=0 // pred_check_branch
    %31 = sbr.rel (0) target = $region25
  $region24: #{tpu_custom_call.1} parent=0 // pred_region
    _
  $region25: #{tpu_custom_call.1} parent=0 // pred_fallthru
    _
  // Predicated region
  $region26: #{tpu_custom_call.1} parent=0 // pred_check
    _
  $region27: #{tpu_custom_call.1} parent=0 // pred_check_branch
    %33 = sbr.rel (0) target = $region29
  $region28: #{tpu_custom_call.1} parent=0 // pred_region
    _
  $region29: #{tpu_custom_call.1} parent=0 // pred_fallthru
    _
  // Predicated region
  $region30: #{tpu_custom_call.1} parent=0 // pred_check
    _
  $region31: #{tpu_custom_call.1} parent=0 // pred_check_branch
    %35 = sbr.rel (0) target = $region33
  $region32: #{tpu_custom_call.1} parent=0 // pred_region
    _
  $region33: #{tpu_custom_call.1} parent=0 // pred_fallthru
    _
  // Predicated region
  $region34: #{tpu_custom_call.1} parent=0 // pred_check
    _
  $region35: #{tpu_custom_call.1} parent=0 // pred_check_branch
    %37 = sbr.rel (0) target = $region37
  $region36: #{tpu_custom_call.1} parent=0 // pred_region
    _
  $region37: #{tpu_custom_call.1} parent=0 // pred_fallthru
    _
  // Predicated region
  $region38: #{tpu_custom_call.1} parent=0 // pred_check
    _
  $region39: #{tpu_custom_call.1} parent=0 // pred_check_branch
    %39 = sbr.rel (0) target = $region41
  $region40: #{tpu_custom_call.1} parent=0 // pred_region
    _
  $region41: #{tpu_custom_call.1} parent=0 // pred_fallthru
    _
  // Predicated region
  $region42: #{tpu_custom_call.1} parent=0 // pred_check
    _
  $region43: #{tpu_custom_call.1} parent=0 // pred_check_branch
    %41 = sbr.rel (0) target = $region45
  $region44: #{tpu_custom_call.1} parent=0 // pred_region
    _
  $region45: #{tpu_custom_call.1} parent=0 // pred_fallthru
    _
  // Predicated region
  $region46: #{tpu_custom_call.1} parent=0 // pred_check
    _
  $region47: #{tpu_custom_call.1} parent=0 // pred_check_branch
    %43 = sbr.rel (0) target = $region49
  $region48: #{tpu_custom_call.1} parent=0 // pred_region
    _
  $region49: #{tpu_custom_call.1} parent=0 // pred_fallthru
    _
  // Predicated region
  $region50: #{tpu_custom_call.1} parent=0 // pred_check
    _
  $region51: #{tpu_custom_call.1} parent=0 // pred_check_branch
    %45 = sbr.rel (0) target = $region53
  $region52: #{tpu_custom_call.1} parent=0 // pred_region
    _
  $region53: #{tpu_custom_call.1} parent=0 // pred_fallthru
    _
  // Predicated region
  $region54: #{tpu_custom_call.1} parent=0 // pred_check
    _
  $region55: #{tpu_custom_call.1} parent=0 // pred_check_branch
    %47 = sbr.rel (0) target = $region57
  $region56: #{tpu_custom_call.1} parent=0 // pred_region
    _
  $region57: #{tpu_custom_call.1} parent=0 // pred_fallthru
    _
  // Predicated region
  $region58: #{tpu_custom_call.1} parent=0 // pred_check
    _
  $region59: #{tpu_custom_call.1} parent=0 // pred_check_branch
    %49 = sbr.rel (0) target = $region61
  $region60: #{tpu_custom_call.1} parent=0 // pred_region
    _
  $region61: #{tpu_custom_call.1} parent=0 // pred_fallthru
    _
  %v51 = vld [vmem:[%s11] sm:$0xff]
  %v52 = vld [vmem:[%s12] sm:$0xf]
  %v53 = vld [vmem:[%s4] sm:$0x1]
  %v54 = vld [vmem:[%s0] sm:$0xf]
  %v55 = vld [vmem:[%s0 + $0x4] sm:$0xf]
  %v56 = vld [vmem:[%s0 + $0xc] sm:$0xf]
  %v57 = vld [vmem:[%s0 + $0x10] sm:$0xf]
  %v58 = vld [vmem:[%s3] sm:$0x3]
  %v59 = vld [vmem:[%s0 + $0x8] sm:$0x1]
  %v60 = vld [vmem:[%s0 + $0x14] sm:$0x1]
  %vm61 = vsmask.f32 3328
  %vm62 = vsmask.f32 7440
  %vm63 = vmor %vm61, %vm62
  %v65 = vshrl.u32 %v54, 16
  %v67 = vrot.slane %v65, 4
  %v68 = vshll.u32 %v54, 16
  %v70 = vrot.slane %v68, 5
  %v71 = vor.u32 %v67, %v70
  %v72 = vrot.slane %v71, 4
  %v74 = vshll.u32 %v55, 16
  %v76 = vrot.slane %v74, 5
  %v77 = vsel %vm63, %v72, %v76
  %v78 = vshrl.u32 %v55, 16
  %v80 = vrot.slane %v78, 4
  %v81 = vor.u32 %v80, %v76
  %v82 = vrot.slane %v81, 4
  %v84 = vshll.u32 %v59, 16
  %v86 = vrot.slane %v84, 5
  %v87 = vsel %vm63, %v82, %v86
  %v89 = vshrl.u32 %v56, 16
  %v91 = vrot.slane %v89, 4
  %v92 = vshll.u32 %v56, 16
  %v94 = vrot.slane %v92, 5
  %v95 = vor.u32 %v91, %v94
  %v96 = vrot.slane %v95, 4
  %v98 = vshll.u32 %v57, 16
  %v100 = vrot.slane %v98, 5
  %v101 = vsel %vm63, %v96, %v100
  %v102 = vshrl.u32 %v57, 16
  %v104 = vrot.slane %v102, 4
  %v105 = vor.u32 %v104, %v100
  %v106 = vrot.slane %v105, 4
  %v108 = vshll.u32 %v60, 16
  %v110 = vrot.slane %v108, 5
  %v111 = vsel %vm63, %v106, %v110
  %s112 = scalar_lea.vmem %s3, 2
  %v113 = vld [vmem:[%s112] sm:$0x3]
  %v114 = vunpack.c.l.b16 %v77
  %v115 = vunpack.c.l.b16 %v87
  %v116 = vunpack.c.l.b16 %v101
  %v117 = vunpack.c.l.b16 %v111
  %v118 = vpack.c.b16 %v115, %v114
  %v119 = vpack.c.b16 %v117, %v116
  %vm120 = vcmask 31744
  %v122 = vsel %vm120, %v118, 0
  %v125 = vsel %vm120, %v119, 0
  %vm127 = vcmask 1041408
  %v129 = vsel %vm127, %v113, 0
  %131 = vmatprep.subr.bf16.mxu0 0
  %132 = vmatpush1.bf16.msra.mxu0 %v129
  %133 = vmatprep.subr.bf16.mxu0 0
  %134 = vmatpush1.bf16.msra.mxu0 0
  %135 = vmatprep.subr.bf16.mxu0 0
  %136 = vmatpush1.bf16.msra.mxu0 0
  %137 = vmatprep.subr.bf16.mxu0 0
  %138 = vmatpush1.bf16.msra.mxu0 0
  %139 = vmatprep.subr.bf16.mxu0 0
  %140 = vmatpush1.bf16.msra.mxu0 0
  %141 = vmatprep.subr.bf16.mxu0 0
  %142 = vmatpush1.bf16.msra.mxu0 0
  %143 = vmatprep.subr.bf16.mxu0 0
  %144 = vmatpush1.bf16.msra.mxu0 0
  %145 = vmatprep.subr.bf16.mxu0 0
  %146 = vmatpush1.bf16.msra.mxu0 0
  %147 = vmatprep.subr.bf16.mxu0 0
  %148 = vmatpush1.bf16.msra.mxu0 0
  %149 = vmatprep.subr.bf16.mxu0 0
  %150 = vmatpush1.bf16.msra.mxu0 0
  %151 = vmatprep.subr.bf16.mxu0 0
  %152 = vmatpush1.bf16.msra.mxu0 0
  %153 = vmatprep.subr.bf16.mxu0 0
  %154 = vmatpush1.bf16.msra.mxu0 0
  %155 = vmatprep.subr.bf16.mxu0 0
  %156 = vmatpush1.bf16.msra.mxu0 0
  %157 = vmatprep.subr.bf16.mxu0 0
  %158 = vmatpush1.bf16.msra.mxu0 0
  %159 = vmatprep.subr.bf16.mxu0 0
  %160 = vmatpush1.bf16.msra.mxu0 0
  %161 = vmatprep.subr.bf16.mxu0 0
  %162 = vmatpush1.bf16.msra.mxu0 0
  %163 = vmatprep.mubr.bf16.mxu0 0
  %164 = vmatmul.mubr.bf16.gmra.mrb[0].mxu0 %v122
  %v165 = vpop.f32.mrb[0].mxu0
  %v166 = vadd.f32 0.0, %v165
  %v167 = vpop.f32.mrb[0].mxu0
  %v168 = vpop.f32.mrb[0].mxu0
  %v169 = vadd.f32 0.0, %v168
  %v170 = vpop.f32.mrb[0].mxu0
  %171 = vmatprep.mubr.bf16.mxu0 0
  %172 = vmatmul.mubr.bf16.gmra.mrb[0].mxu0 %v125
  %v173 = vpop.f32.mrb[0].mxu0
  %v174 = vadd.f32 0.0, %v173
  %v175 = vpop.f32.mrb[0].mxu0
  %v176 = vpop.f32.mrb[0].mxu0
  %v177 = vadd.f32 0.0, %v176
  %v178 = vpop.f32.mrb[0].mxu0
  %179 = vdwg.mxu0
  %v184 = vunpack.c.l.b16 %v54
  %v185 = vunpack.c.l.b16 %v55
  %v186 = vunpack.c.l.b16 %v56
  %v187 = vunpack.c.l.b16 %v57
  %v188 = vpack.c.b16 %v185, %v184
  %v189 = vpack.c.b16 %v187, %v186
  %v191 = vsel %vm120, %v188, 0
  %v194 = vsel %vm120, %v189, 0
  %v197 = vsel %vm127, %v58, 0
  %199 = vmatprep.subr.bf16.mxu0 0
  %200 = vmatpush1.bf16.msra.mxu0 %v197
  %201 = vmatprep.subr.bf16.mxu0 0
  %202 = vmatpush1.bf16.msra.mxu0 0
  %203 = vmatprep.subr.bf16.mxu0 0
  %204 = vmatpush1.bf16.msra.mxu0 0
  %205 = vmatprep.subr.bf16.mxu0 0
  %206 = vmatpush1.bf16.msra.mxu0 0
  %207 = vmatprep.subr.bf16.mxu0 0
  %208 = vmatpush1.bf16.msra.mxu0 0
  %209 = vmatprep.subr.bf16.mxu0 0
  %210 = vmatpush1.bf16.msra.mxu0 0
  %211 = vmatprep.subr.bf16.mxu0 0
  %212 = vmatpush1.bf16.msra.mxu0 0
  %213 = vmatprep.subr.bf16.mxu0 0
  %214 = vmatpush1.bf16.msra.mxu0 0
  %215 = vmatprep.subr.bf16.mxu0 0
  %216 = vmatpush1.bf16.msra.mxu0 0
  %217 = vmatprep.subr.bf16.mxu0 0
  %218 = vmatpush1.bf16.msra.mxu0 0
  %219 = vmatprep.subr.bf16.mxu0 0
  %220 = vmatpush1.bf16.msra.mxu0 0
  %221 = vmatprep.subr.bf16.mxu0 0
  %222 = vmatpush1.bf16.msra.mxu0 0
  %223 = vmatprep.subr.bf16.mxu0 0
  %224 = vmatpush1.bf16.msra.mxu0 0
  %225 = vmatprep.subr.bf16.mxu0 0
  %226 = vmatpush1.bf16.msra.mxu0 0
  %227 = vmatprep.subr.bf16.mxu0 0
  %228 = vmatpush1.bf16.msra.mxu0 0
  %229 = vmatprep.subr.bf16.mxu0 0
  %230 = vmatpush1.bf16.msra.mxu0 0
  %231 = vmatprep.mubr.bf16.mxu0 0
  %232 = vmatmul.mubr.bf16.gmra.mrb[0].mxu0 %v191
  %v233 = vpop.f32.mrb[0].mxu0
  %v234 = vadd.f32 %v166, %v233
  %v235 = vpop.f32.mrb[0].mxu0
  %v236 = vpop.f32.mrb[0].mxu0
  %v237 = vadd.f32 %v169, %v236
  %v238 = vpop.f32.mrb[0].mxu0
  %239 = vmatprep.mubr.bf16.mxu0 0
  %240 = vmatmul.mubr.bf16.gmra.mrb[0].mxu0 %v194
  %v241 = vpop.f32.mrb[0].mxu0
  %v242 = vadd.f32 %v174, %v241
  %v243 = vpop.f32.mrb[0].mxu0
  %v244 = vpop.f32.mrb[0].mxu0
  %v245 = vadd.f32 %v177, %v244
  %v246 = vpop.f32.mrb[0].mxu0
  %247 = vdwg.mxu0
  %v248 = vld [vmem:[%s0] sm:$0xe]
  %v249 = vld [vmem:[%s0 + $0xc] sm:$0xe]
  %vm254 = vcmask 1042432
  %vm255 = vcmask 1046532
  %vm256 = vmor %vm254, %vm255
  %v257 = vrot.slane %v248, 5
  %v258 = vrot.slane %v257, 4
  %v259 = vrot.slane %v55, 5
  %v260 = vsel %vm256, %v258, %v259
  %v261 = vrot.slane %v259, 4
  %v262 = vrot.slane %v59, 5
  %v263 = vsel %vm256, %v261, %v262
  %v264 = vrot.slane %v249, 5
  %v265 = vrot.slane %v264, 4
  %v266 = vrot.slane %v57, 5
  %v267 = vsel %vm256, %v265, %v266
  %v268 = vrot.slane %v266, 4
  %v269 = vrot.slane %v60, 5
  %v270 = vsel %vm256, %v268, %v269
  %s271 = scalar_lea.vmem %s3, 4
  %v272 = vld [vmem:[%s271] sm:$0x3]
  %v273 = vunpack.c.l.b16 %v260
  %v274 = vunpack.c.l.b16 %v263
  %v275 = vunpack.c.l.b16 %v267
  %v276 = vunpack.c.l.b16 %v270
  %v277 = vpack.c.b16 %v274, %v273
  %v278 = vpack.c.b16 %v276, %v275
  %v280 = vsel %vm120, %v277, 0
  %v283 = vsel %vm120, %v278, 0
  %v286 = vsel %vm127, %v272, 0
  %288 = vmatprep.subr.bf16.mxu0 0
  %289 = vmatpush1.bf16.msra.mxu0 %v286
  %290 = vmatprep.subr.bf16.mxu0 0
  %291 = vmatpush1.bf16.msra.mxu0 0
  %292 = vmatprep.subr.bf16.mxu0 0
  %293 = vmatpush1.bf16.msra.mxu0 0
  %294 = vmatprep.subr.bf16.mxu0 0
  %295 = vmatpush1.bf16.msra.mxu0 0
  %296 = vmatprep.subr.bf16.mxu0 0
  %297 = vmatpush1.bf16.msra.mxu0 0
  %298 = vmatprep.subr.bf16.mxu0 0
  %299 = vmatpush1.bf16.msra.mxu0 0
  %300 = vmatprep.subr.bf16.mxu0 0
  %301 = vmatpush1.bf16.msra.mxu0 0
  %302 = vmatprep.subr.bf16.mxu0 0
  %303 = vmatpush1.bf16.msra.mxu0 0
  %304 = vmatprep.subr.bf16.mxu0 0
  %305 = vmatpush1.bf16.msra.mxu0 0
  %306 = vmatprep.subr.bf16.mxu0 0
  %307 = vmatpush1.bf16.msra.mxu0 0
  %308 = vmatprep.subr.bf16.mxu0 0
  %309 = vmatpush1.bf16.msra.mxu0 0
  %310 = vmatprep.subr.bf16.mxu0 0
  %311 = vmatpush1.bf16.msra.mxu0 0
  %312 = vmatprep.subr.bf16.mxu0 0
  %313 = vmatpush1.bf16.msra.mxu0 0
  %314 = vmatprep.subr.bf16.mxu0 0
  %315 = vmatpush1.bf16.msra.mxu0 0
  %316 = vmatprep.subr.bf16.mxu0 0
  %317 = vmatpush1.bf16.msra.mxu0 0
  %318 = vmatprep.subr.bf16.mxu0 0
  %319 = vmatpush1.bf16.msra.mxu0 0
  %320 = vmatprep.mubr.bf16.mxu0 0
  %321 = vmatmul.mubr.bf16.gmra.mrb[0].mxu0 %v280
  %v322 = vpop.f32.mrb[0].mxu0
  %v323 = vadd.f32 0.0, %v322
  %v324 = vpop.f32.mrb[0].mxu0
  %v325 = vpop.f32.mrb[0].mxu0
  %v326 = vadd.f32 0.0, %v325
  %v327 = vpop.f32.mrb[0].mxu0
  %328 = vmatprep.mubr.bf16.mxu0 0
  %329 = vmatmul.mubr.bf16.gmra.mrb[0].mxu0 %v283
  %v330 = vpop.f32.mrb[0].mxu0
  %v331 = vadd.f32 0.0, %v330
  %v332 = vpop.f32.mrb[0].mxu0
  %v333 = vpop.f32.mrb[0].mxu0
  %v334 = vadd.f32 0.0, %v333
  %v335 = vpop.f32.mrb[0].mxu0
  %336 = vdwg.mxu0
  %v337 = vadd.f32 %v234, %v323
  %v338 = vadd.f32 %v237, %v326
  %v339 = vadd.f32 %v242, %v331
  %v340 = vadd.f32 %v245, %v334
  %v342 = vlaneseq
  %v343 = vshrl.u32 %v342, 7
  %v344 = vsub.s32 0, %v343
  %v345 = vrot.slane %v53, %v344
  %v347 = vadd.f32 %v337, %v345
  %v348 = vadd.f32 %v338, %v345
  %v349 = vadd.f32 %v339, %v345
  %v350 = vadd.f32 %v340, %v345
  %v351 = vld [vmem:[%s5] sm:$0x1]
  %v352 = vld [vmem:[%s6] sm:$0x1]
  %vm353 = vcmask 64512
  %v354 = vsel %vm353, %v347, 0.0
  %v355 = vsel %vm353, %v348, 0.0
  %v356 = vadd.f32 %v354, %v355
  %v357 = vrot.slane %v356, 4
  %v358 = vadd.f32 %v356, %v357
  %v359 = vrot.slane %v358, 2
  %v360 = vadd.f32 %v358, %v359
  %v361 = vrot.slane %v360, 1
  %v362 = vadd.f32 %v360, %v361
  %v363 = vsel %vm353, %v349, 0.0
  %v364 = vsel %vm353, %v350, 0.0
  %v365 = vadd.f32 %v363, %v364
  %v366 = vrot.slane %v365, 4
  %v367 = vadd.f32 %v365, %v366
  %v368 = vrot.slane %v367, 2
  %v369 = vadd.f32 %v367, %v368
  %v370 = vrot.slane %v369, 1
  %v371 = vadd.f32 %v369, %v370
  %v372 = vmul.f32 %v347, %v347
  %v373 = vmul.f32 %v348, %v348
  %v374 = vmul.f32 %v349, %v349
  %v375 = vmul.f32 %v350, %v350
  %v376 = vsel %vm353, %v372, 0.0
  %v377 = vsel %vm353, %v373, 0.0
  %v378 = vadd.f32 %v376, %v377
  %v379 = vrot.slane %v378, 4
  %v380 = vadd.f32 %v378, %v379
  %v381 = vrot.slane %v380, 2
  %v382 = vadd.f32 %v380, %v381
  %v383 = vrot.slane %v382, 1
  %v384 = vadd.f32 %v382, %v383
  %v385 = vsel %vm353, %v374, 0.0
  %v386 = vsel %vm353, %v375, 0.0
  %v387 = vadd.f32 %v385, %v386
  %v388 = vrot.slane %v387, 4
  %v389 = vadd.f32 %v387, %v388
  %v390 = vrot.slane %v389, 2
  %v391 = vadd.f32 %v389, %v390
  %v392 = vrot.slane %v391, 1
  %v393 = vadd.f32 %v391, %v392
  %vm396 = vcmask 1041409
  %v397 = vsel %vm396, %v371, %v362
  %vm401 = vcmask 1043459
  %v402 = vsel %vm401, %v393, %v384
  %v404 = vsel %vm127, %v397, %v402
  %v406 = vsel %vm353, %v404, 0
  %408 = vmatprep.subr.mxu0 0.0
  %409 = vmatpush1.msra.mxu0 %v51
  %410 = vmatprep.subr.mxu0 0.0
  %411 = vmatpush1.msra.mxu0 0.0
  %412 = vmatprep.subr.mxu0 0.0
  %413 = vmatpush1.msra.mxu0 0.0
  %414 = vmatprep.subr.mxu0 0.0
  %415 = vmatpush1.msra.mxu0 0.0
  %416 = vmatprep.subr.mxu0 0.0
  %417 = vmatpush1.msra.mxu0 0.0
  %418 = vmatprep.subr.mxu0 0.0
  %419 = vmatpush1.msra.mxu0 0.0
  %420 = vmatprep.subr.mxu0 0.0
  %421 = vmatpush1.msra.mxu0 0.0
  %422 = vmatprep.subr.mxu0 0.0
  %423 = vmatpush1.msra.mxu0 0.0
  %424 = vmatprep.subr.mxu0 0.0
  %425 = vmatpush1.msra.mxu0 0.0
  %426 = vmatprep.subr.mxu0 0.0
  %427 = vmatpush1.msra.mxu0 0.0
  %428 = vmatprep.subr.mxu0 0.0
  %429 = vmatpush1.msra.mxu0 0.0
  %430 = vmatprep.subr.mxu0 0.0
  %431 = vmatpush1.msra.mxu0 0.0
  %432 = vmatprep.subr.mxu0 0.0
  %433 = vmatpush1.msra.mxu0 0.0
  %434 = vmatprep.subr.mxu0 0.0
  %435 = vmatpush1.msra.mxu0 0.0
  %436 = vmatprep.subr.mxu0 0.0
  %437 = vmatpush1.msra.mxu0 0.0
  %438 = vmatprep.subr.mxu0 0.0
  %439 = vmatpush1.msra.mxu0 0.0
  %440 = vmatprep.subr.mxu0 0.0
  %441 = vmatpush1.msra.mxu0 0.0
  %442 = vmatprep.subr.mxu0 0.0
  %443 = vmatpush1.msra.mxu0 0.0
  %444 = vmatprep.subr.mxu0 0.0
  %445 = vmatpush1.msra.mxu0 0.0
  %446 = vmatprep.subr.mxu0 0.0
  %447 = vmatpush1.msra.mxu0 0.0
  %448 = vmatprep.subr.mxu0 0.0
  %449 = vmatpush1.msra.mxu0 0.0
  %450 = vmatprep.subr.mxu0 0.0
  %451 = vmatpush1.msra.mxu0 0.0
  %452 = vmatprep.subr.mxu0 0.0
  %453 = vmatpush1.msra.mxu0 0.0
  %454 = vmatprep.subr.mxu0 0.0
  %455 = vmatpush1.msra.mxu0 0.0
  %456 = vmatprep.subr.mxu0 0.0
  %457 = vmatpush1.msra.mxu0 0.0
  %458 = vmatprep.subr.mxu0 0.0
  %459 = vmatpush1.msra.mxu0 0.0
  %460 = vmatprep.subr.mxu0 0.0
  %461 = vmatpush1.msra.mxu0 0.0
  %462 = vmatprep.subr.mxu0 0.0
  %463 = vmatpush1.msra.mxu0 0.0
  %464 = vmatprep.subr.mxu0 0.0
  %465 = vmatpush1.msra.mxu0 0.0
  %466 = vmatprep.subr.mxu0 0.0
  %467 = vmatpush1.msra.mxu0 0.0
  %468 = vmatprep.subr.mxu0 0.0
  %469 = vmatpush1.msra.mxu0 0.0
  %470 = vmatprep.subr.mxu0 0.0
  %471 = vmatpush1.msra.mxu0 0.0
  %472 = vmatprep.mubr.f32.mxu0 0.0
  %473 = vmatmul.mubr.f32.gmra.mrb[0].mxu0 %v406
  %v474 = vpop.f32.mrb[0].mxu0
  %v475 = vadd.f32 0.0, %v474
  %v476 = vpop.f32.mrb[0].mxu0
  %477 = vdwg.mxu0
  %v479 = vsel %vm120, %v475, 0
  %vm481 = vcmask 1043456
  %v483 = vsel %vm481, %v52, 0
  %485 = vmatprep.subr.mxu0 0.0
  %486 = vmatpush1.msra.mxu0 %v483
  %487 = vmatprep.subr.mxu0 0.0
  %488 = vmatpush1.msra.mxu0 0.0
  %489 = vmatprep.subr.mxu0 0.0
  %490 = vmatpush1.msra.mxu0 0.0
  %491 = vmatprep.subr.mxu0 0.0
  %492 = vmatpush1.msra.mxu0 0.0
  %493 = vmatprep.subr.mxu0 0.0
  %494 = vmatpush1.msra.mxu0 0.0
  %495 = vmatprep.subr.mxu0 0.0
  %496 = vmatpush1.msra.mxu0 0.0
  %497 = vmatprep.subr.mxu0 0.0
  %498 = vmatpush1.msra.mxu0 0.0
  %499 = vmatprep.subr.mxu0 0.0
  %500 = vmatpush1.msra.mxu0 0.0
  %501 = vmatprep.subr.mxu0 0.0
  %502 = vmatpush1.msra.mxu0 0.0
  %503 = vmatprep.subr.mxu0 0.0
  %504 = vmatpush1.msra.mxu0 0.0
  %505 = vmatprep.subr.mxu0 0.0
  %506 = vmatpush1.msra.mxu0 0.0
  %507 = vmatprep.subr.mxu0 0.0
  %508 = vmatpush1.msra.mxu0 0.0
  %509 = vmatprep.subr.mxu0 0.0
  %510 = vmatpush1.msra.mxu0 0.0
  %511 = vmatprep.subr.mxu0 0.0
  %512 = vmatpush1.msra.mxu0 0.0
  %513 = vmatprep.subr.mxu0 0.0
  %514 = vmatpush1.msra.mxu0 0.0
  %515 = vmatprep.subr.mxu0 0.0
  %516 = vmatpush1.msra.mxu0 0.0
  %517 = vmatprep.subr.mxu0 0.0
  %518 = vmatpush1.msra.mxu0 0.0
  %519 = vmatprep.subr.mxu0 0.0
  %520 = vmatpush1.msra.mxu0 0.0
  %521 = vmatprep.subr.mxu0 0.0
  %522 = vmatpush1.msra.mxu0 0.0
  %523 = vmatprep.subr.mxu0 0.0
  %524 = vmatpush1.msra.mxu0 0.0
  %525 = vmatprep.subr.mxu0 0.0
  %526 = vmatpush1.msra.mxu0 0.0
  %527 = vmatprep.subr.mxu0 0.0
  %528 = vmatpush1.msra.mxu0 0.0
  %529 = vmatprep.subr.mxu0 0.0
  %530 = vmatpush1.msra.mxu0 0.0
  %531 = vmatprep.subr.mxu0 0.0
  %532 = vmatpush1.msra.mxu0 0.0
  %533 = vmatprep.subr.mxu0 0.0
  %534 = vmatpush1.msra.mxu0 0.0
  %535 = vmatprep.subr.mxu0 0.0
  %536 = vmatpush1.msra.mxu0 0.0
  %537 = vmatprep.subr.mxu0 0.0
  %538 = vmatpush1.msra.mxu0 0.0
  %539 = vmatprep.subr.mxu0 0.0
  %540 = vmatpush1.msra.mxu0 0.0
  %541 = vmatprep.subr.mxu0 0.0
  %542 = vmatpush1.msra.mxu0 0.0
  %543 = vmatprep.subr.mxu0 0.0
  %544 = vmatpush1.msra.mxu0 0.0
  %545 = vmatprep.subr.mxu0 0.0
  %546 = vmatpush1.msra.mxu0 0.0
  %547 = vmatprep.subr.mxu0 0.0
  %548 = vmatpush1.msra.mxu0 0.0
  %549 = vmatprep.mubr.f32.mxu0 0.0
  %550 = vmatmul.mubr.f32.gmra.mrb[0].mxu0 %v479
  %v551 = vpop.f32.mrb[0].mxu0
  %v552 = vadd.f32 0.0, %v551
  %v553 = vpop.f32.mrb[0].mxu0
  %554 = vdwg.mxu0
  %v555 = vmul.f32 %v552, 0.03125
  %v556 = vmul.f32 %v555, %v555
  %v558 = vrot.slane %v556, 6
  %v560 = vsub.f32 %v555, %v558
  %v561 = vadd.f32 %v560, 1e-05
  %v562 = vrsqrt.pop %v561
  %v565 = vunpack.c.l.s4 1966171168
  %v566 = vunpack.c.0.s8 %v565
  %v567 = vlaneseq
  %v568 = vshrl.u32 %v567, 7
  %v569 = vsub.s32 %v566, %v568
  %v570 = vrot.slane %v555, %v569
  %v571 = vcombine.high %v570, %v570
  %v573 = vunpack.c.l.s4 1966171168
  %v574 = vunpack.c.0.s8 %v573
  %v575 = vlaneseq
  %v576 = vshrl.u32 %v575, 7
  %v577 = vsub.s32 %v574, %v576
  %v578 = vrot.slane %v570, %v577
  %v580 = vunpack.c.l.s4 1966171168
  %v581 = vunpack.c.0.s8 %v580
  %v582 = vlaneseq
  %v583 = vshrl.u32 %v582, 7
  %v584 = vsub.s32 %v581, %v583
  %v585 = vrot.slane %v571, %v584
  %v586 = vlaneseq
  %v587 = vshrl.u32 %v586, 7
  %v588 = vsub.s32 0, %v587
  %v589 = vrot.slane %v578, %v588
  %v590 = vlaneseq
  %v591 = vshrl.u32 %v590, 7
  %v592 = vsub.s32 0, %v591
  %v593 = vrot.slane %v585, %v592
  %v596 = vsub.f32 %v347, %v589
  %v597 = vsub.f32 %v348, %v589
  %v598 = vsub.f32 %v349, %v593
  %v599 = vsub.f32 %v350, %v593
  %v602 = vunpack.c.l.s4 1966171168
  %v603 = vunpack.c.0.s8 %v602
  %v604 = vlaneseq
  %v605 = vshrl.u32 %v604, 7
  %v606 = vsub.s32 %v603, %v605
  %v607 = vrot.slane %v562, %v606
  %v608 = vcombine.high %v607, %v607
  %v610 = vunpack.c.l.s4 1966171168
  %v611 = vunpack.c.0.s8 %v610
  %v612 = vlaneseq
  %v613 = vshrl.u32 %v612, 7
  %v614 = vsub.s32 %v611, %v613
  %v615 = vrot.slane %v607, %v614
  %v617 = vunpack.c.l.s4 1966171168
  %v618 = vunpack.c.0.s8 %v617
  %v619 = vlaneseq
  %v620 = vshrl.u32 %v619, 7
  %v621 = vsub.s32 %v618, %v620
  %v622 = vrot.slane %v608, %v621
  %v623 = vcombine.high %v615, %v615
  %v624 = vcombine.high %v622, %v622
  %v625 = vlaneseq
  %v626 = vshrl.u32 %v625, 7
  %v627 = vsub.s32 0, %v626
  %v628 = vrot.slane %v623, %v627
  %v629 = vlaneseq
  %v630 = vshrl.u32 %v629, 7
  %v631 = vsub.s32 0, %v630
  %v632 = vrot.slane %v624, %v631
  %v635 = vmul.f32 %v596, %v628
  %v636 = vmul.f32 %v597, %v628
  %v637 = vmul.f32 %v598, %v632
  %v638 = vmul.f32 %v599, %v632
  %v640 = vlaneseq
  %v641 = vshrl.u32 %v640, 7
  %v642 = vsub.s32 0, %v641
  %v643 = vrot.slane %v351, %v642
  %v645 = vmul.f32 %v635, %v643
  %v646 = vmul.f32 %v636, %v643
  %v647 = vmul.f32 %v637, %v643
  %v648 = vmul.f32 %v638, %v643
  %v650 = vlaneseq
  %v651 = vshrl.u32 %v650, 7
  %v652 = vsub.s32 0, %v651
  %v653 = vrot.slane %v352, %v652
  %v655 = vadd.f32 %v645, %v653
  %v656 = vadd.f32 %v646, %v653
  %v657 = vadd.f32 %v647, %v653
  %v658 = vadd.f32 %v648, %v653
  %v659 = vand.u32 2147483647, %v655
  %v660 = vand.u32 2147483647, %v656
  %v661 = vand.u32 2147483647, %v657
  %v662 = vand.u32 2147483647, %v658
  %v663 = vsub.f32 0.0, %v659
  %v664 = vsub.f32 0.0, %v660
  %v665 = vsub.f32 0.0, %v661
  %v666 = vsub.f32 0.0, %v662
  %v667 = vmul.f32 %v663, 1.442695
  %v668 = vpow.pop %v667
  %v669 = vmul.f32 %v664, 1.442695
  %v670 = vpow.pop %v669
  %v671 = vmul.f32 %v665, 1.442695
  %v672 = vpow.pop %v671
  %v673 = vmul.f32 %v666, 1.442695
  %v674 = vpow.pop %v673
  %v675 = vmul.f32 %v668, %v668
  %v676 = vmul.f32 %v670, %v670
  %v677 = vmul.f32 %v672, %v672
  %v678 = vmul.f32 %v674, %v674
  %vm679 = vcmp.ge.f32.partialorder %v655, 0.0
  %vm680 = vcmp.ge.f32.partialorder %v656, 0.0
  %vm681 = vcmp.ge.f32.partialorder %v657, 0.0
  %vm682 = vcmp.ge.f32.partialorder %v658, 0.0
  %v683 = vmul.f32 %v668, 2.0
  %v684 = vmul.f32 %v670, 2.0
  %v685 = vmul.f32 %v672, 2.0
  %v686 = vmul.f32 %v674, 2.0
  %v687 = vadd.f32 %v683, 1.0
  %v688 = vadd.f32 %v684, 1.0
  %v689 = vadd.f32 %v685, 1.0
  %v690 = vadd.f32 %v686, 1.0
  %v691 = vadd.f32 %v683, %v675
  %v692 = vadd.f32 %v684, %v676
  %v693 = vadd.f32 %v685, %v677
  %v694 = vadd.f32 %v686, %v678
  %v695 = vsel %vm679, %v687, %v691
  %v696 = vsel %vm680, %v688, %v692
  %v697 = vsel %vm681, %v689, %v693
  %v698 = vsel %vm682, %v690, %v694
  %v699 = vmul.f32 %v675, 2.0
  %v700 = vmul.f32 %v676, 2.0
  %v701 = vmul.f32 %v677, 2.0
  %v702 = vmul.f32 %v678, 2.0
  %v703 = vadd.f32 %v687, %v699
  %v704 = vadd.f32 %v688, %v700
  %v705 = vadd.f32 %v689, %v701
  %v706 = vadd.f32 %v690, %v702
  %v707 = vadd.f32 %v683, 2.0
  %v708 = vadd.f32 %v684, 2.0
  %v709 = vadd.f32 %v685, 2.0
  %v710 = vadd.f32 %v686, 2.0
  %v711 = vadd.f32 %v707, %v675
  %v712 = vadd.f32 %v708, %v676
  %v713 = vadd.f32 %v709, %v677
  %v714 = vadd.f32 %v710, %v678
  %v715 = vsel %vm679, %v703, %v711
  %v716 = vsel %vm680, %v704, %v712
  %v717 = vsel %vm681, %v705, %v713
  %v718 = vsel %vm682, %v706, %v714
  %v719 = vmul.f32 %v655, %v695
  %v720 = vmul.f32 %v656, %v696
  %v721 = vmul.f32 %v657, %v697
  %v722 = vmul.f32 %v658, %v698
  %v723 = vrcp.pop %v715
  %v724 = vmul.f32 %v719, %v723
  %v725 = vrcp.pop %v716
  %v726 = vmul.f32 %v720, %v725
  %v727 = vrcp.pop %v717
  %v728 = vmul.f32 %v721, %v727
  %v729 = vrcp.pop %v718
  %v730 = vmul.f32 %v722, %v729
  %v731 = vld [vmem:[%s1] sm:$0x1]
  %v732 = vld [vmem:[%s1 + $0x1] sm:$0x1]
  %v735 = vlaneseq
  %v736 = vshrl.u32 %v735, 7
  %v737 = vsub.s32 0, %v736
  %v738 = vrot.slane %v731, %v737
  %v739 = vlaneseq
  %v740 = vshrl.u32 %v739, 7
  %v741 = vsub.s32 0, %v740
  %v742 = vrot.slane %v732, %v741
  %v745 = vmul.f32 %v738, %v724
  %v746 = vmul.f32 %v738, %v726
  %v747 = vmul.f32 %v742, %v728
  %v748 = vmul.f32 %v742, %v730
  %v749 = vld [vmem:[%s2] sm:$0x1]
  %v750 = vld [vmem:[%s2 + $0x1] sm:$0x1]
  %v753 = vlaneseq
  %v754 = vshrl.u32 %v753, 7
  %v755 = vsub.s32 0, %v754
  %v756 = vrot.slane %v749, %v755
  %v757 = vlaneseq
  %v758 = vshrl.u32 %v757, 7
  %v759 = vsub.s32 0, %v758
  %v760 = vrot.slane %v750, %v759
  %v763 = vadd.f32 %v745, %v756
  %v764 = vadd.f32 %v746, %v756
  %v765 = vadd.f32 %v747, %v760
  %v766 = vadd.f32 %v748, %v760
  %vm767 = vcmask 57344
  %vm768 = vsmask.f32 256
  %vm769 = vmand %vm767, %vm768
  %v770 = vld [vmem:[#allocation2] sm:$0x1]
  %v771 = vsel %vm769, 0, %v770
  %772 = vst [vmem:[#allocation2] sm:$0x1] %v771
  %v773 = vld [vmem:[#allocation2 + $0xc] sm:$0x1]
  %v774 = vsel %vm769, 0, %v773
  %775 = vst [vmem:[#allocation2 + $0xc] sm:$0x1] %v774
  %vm776 = vsmask.f32 7938
  %vm777 = vmand %vm767, %vm776
  %v778 = vld [vmem:[#allocation2 + $0x8] sm:$0x1]
  %v779 = vsel %vm777, 0, %v778
  %780 = vst [vmem:[#allocation2 + $0x8] sm:$0x1] %v779
  %v781 = vld [vmem:[#allocation2 + $0x14] sm:$0x1]
  %v782 = vsel %vm777, 0, %v781
  %783 = vst [vmem:[#allocation2 + $0x14] sm:$0x1] %v782
  %v784 = vpack.c.bf16 %v764, %v763
  %v785 = vpack.c.bf16 %v766, %v765
  %v788 = vunpack.c.l.b16 %v784
  %v789 = vunpack.c.h.b16 %v784
  %v790 = vunpack.c.l.b16 %v785
  %v791 = vunpack.c.h.b16 %v785
  %v792 = vpack.c.b16 %v788, %v788
  %v793 = vpack.c.b16 %v789, %v789
  %v794 = vpack.c.b16 %v790, %v790
  %v795 = vpack.c.b16 %v791, %v791
  %vm796 = vsmask.f32 4368
  %vm797 = vmor %vm768, %vm796
  %v799 = vshrl.u32 %v792, 16
  %v801 = vrot.slane %v799, 7
  %v802 = vshll.u32 %v792, 16
  %v804 = vor.u32 %v801, %v802
  %v805 = vrot.slane %v801, 4
  %v807 = vshrl.u32 %v793, 16
  %v809 = vrot.slane %v807, 7
  %v810 = vshll.u32 %v793, 16
  %v812 = vor.u32 %v809, %v810
  %v813 = vsel %vm797, %v805, %v812
  %v814 = vrot.slane %v809, 4
  %v816 = vshrl.u32 %v794, 16
  %v818 = vrot.slane %v816, 7
  %v819 = vshll.u32 %v794, 16
  %v821 = vor.u32 %v818, %v819
  %v822 = vrot.slane %v818, 4
  %v824 = vshrl.u32 %v795, 16
  %v826 = vrot.slane %v824, 7
  %v827 = vshll.u32 %v795, 16
  %v829 = vor.u32 %v826, %v827
  %v830 = vsel %vm797, %v822, %v829
  %v831 = vrot.slane %v826, 4
  %vm838 = vcmask 60416
  %vm839 = vmand %vm838, %vm776
  %v840 = vld [vmem:[#allocation2] sm:$0xf]
  %v841 = vsel %vm839, %v804, %v840
  %842 = vst [vmem:[#allocation2] sm:$0xf] %v841
  %vm843 = vcmask 60416
  %844 = vst.msk [vmem:[#allocation2 + $0x4] sm:$0xf] %vm843, %v813
  %v845 = vld [vmem:[#allocation2 + $0x8] sm:$0x1]
  %v846 = vsel %vm769, %v814, %v845
  %847 = vst [vmem:[#allocation2 + $0x8] sm:$0x1] %v846
  %v848 = vld [vmem:[#allocation2 + $0xc] sm:$0xf]
  %v849 = vsel %vm839, %v821, %v848
  %850 = vst [vmem:[#allocation2 + $0xc] sm:$0xf] %v849
  %851 = vst.msk [vmem:[#allocation2 + $0x10] sm:$0xf] %vm843, %v830
  %v852 = vld [vmem:[#allocation2 + $0x14] sm:$0x1]
  %v853 = vsel %vm769, %v831, %v852
  %854 = vst [vmem:[#allocation2 + $0x14] sm:$0x1] %v853
  %v855 = vld [vmem:[%s8] sm:$0x1]
  %v856 = vld [vmem:[#allocation2] sm:$0xf]
  %v857 = vld [vmem:[#allocation2 + $0x4] sm:$0xf]
  %v858 = vld [vmem:[#allocation2 + $0xc] sm:$0xf]
  %v859 = vld [vmem:[#allocation2 + $0x10] sm:$0xf]
  %v860 = vld [vmem:[%s7] sm:$0xf]
  %v861 = vld [vmem:[#allocation2 + $0x8] sm:$0x1]
  %v862 = vld [vmem:[#allocation2 + $0x14] sm:$0x1]
  %v864 = vshrl.u32 %v856, 16
  %v866 = vrot.slane %v864, 4
  %v867 = vshll.u32 %v856, 16
  %v869 = vrot.slane %v867, 5
  %v870 = vor.u32 %v866, %v869
  %v871 = vrot.slane %v870, 4
  %v873 = vshll.u32 %v857, 16
  %v875 = vrot.slane %v873, 5
  %v876 = vsel %vm63, %v871, %v875
  %v877 = vshrl.u32 %v857, 16
  %v879 = vrot.slane %v877, 4
  %v880 = vor.u32 %v879, %v875
  %v881 = vrot.slane %v880, 4
  %v883 = vshll.u32 %v861, 16
  %v885 = vrot.slane %v883, 5
  %v886 = vsel %vm63, %v881, %v885
  %v888 = vshrl.u32 %v858, 16
  %v890 = vrot.slane %v888, 4
  %v891 = vshll.u32 %v858, 16
  %v893 = vrot.slane %v891, 5
  %v894 = vor.u32 %v890, %v893
  %v895 = vrot.slane %v894, 4
  %v897 = vshll.u32 %v859, 16
  %v899 = vrot.slane %v897, 5
  %v900 = vsel %vm63, %v895, %v899
  %v901 = vshrl.u32 %v859, 16
  %v903 = vrot.slane %v901, 4
  %v904 = vor.u32 %v903, %v899
  %v905 = vrot.slane %v904, 4
  %v907 = vshll.u32 %v862, 16
  %v909 = vrot.slane %v907, 5
  %v910 = vsel %vm63, %v905, %v909
  %s911 = scalar_lea.vmem %s7, 4
  %v912 = vld [vmem:[%s911] sm:$0xf]
  %v913 = vunpack.c.l.b16 %v876
  %v914 = vunpack.c.l.b16 %v886
  %v915 = vunpack.c.l.b16 %v900
  %v916 = vunpack.c.l.b16 %v910
  %v917 = vpack.c.b16 %v914, %v913
  %v918 = vpack.c.b16 %v916, %v915
  %v920 = vsel %vm353, %v917, 0
  %v923 = vsel %vm353, %v918, 0
  %v926 = vsel %vm481, %v912, 0
  %928 = vmatprep.subr.bf16.mxu0 0
  %929 = vmatpush1.bf16.msra.mxu0 %v926
  %930 = vmatprep.subr.bf16.mxu0 0
  %931 = vmatpush1.bf16.msra.mxu0 0
  %932 = vmatprep.subr.bf16.mxu0 0
  %933 = vmatpush1.bf16.msra.mxu0 0
  %934 = vmatprep.subr.bf16.mxu0 0
  %935 = vmatpush1.bf16.msra.mxu0 0
  %936 = vmatprep.subr.bf16.mxu0 0
  %937 = vmatpush1.bf16.msra.mxu0 0
  %938 = vmatprep.subr.bf16.mxu0 0
  %939 = vmatpush1.bf16.msra.mxu0 0
  %940 = vmatprep.subr.bf16.mxu0 0
  %941 = vmatpush1.bf16.msra.mxu0 0
  %942 = vmatprep.subr.bf16.mxu0 0
  %943 = vmatpush1.bf16.msra.mxu0 0
  %944 = vmatprep.subr.bf16.mxu0 0
  %945 = vmatpush1.bf16.msra.mxu0 0
  %946 = vmatprep.subr.bf16.mxu0 0
  %947 = vmatpush1.bf16.msra.mxu0 0
  %948 = vmatprep.subr.bf16.mxu0 0
  %949 = vmatpush1.bf16.msra.mxu0 0
  %950 = vmatprep.subr.bf16.mxu0 0
  %951 = vmatpush1.bf16.msra.mxu0 0
  %952 = vmatprep.subr.bf16.mxu0 0
  %953 = vmatpush1.bf16.msra.mxu0 0
  %954 = vmatprep.subr.bf16.mxu0 0
  %955 = vmatpush1.bf16.msra.mxu0 0
  %956 = vmatprep.subr.bf16.mxu0 0
  %957 = vmatpush1.bf16.msra.mxu0 0
  %958 = vmatprep.subr.bf16.mxu0 0
  %959 = vmatpush1.bf16.msra.mxu0 0
  %960 = vmatprep.mubr.bf16.mxu0 0
  %961 = vmatmul.mubr.bf16.gmra.mrb[0].mxu0 %v920
  %v962 = vpop.f32.mrb[0].mxu0
  %v963 = vadd.f32 0.0, %v962
  %v964 = vpop.f32.mrb[0].mxu0
  %v965 = vpop.f32.mrb[0].mxu0
  %v966 = vadd.f32 0.0, %v965
  %v967 = vpop.f32.mrb[0].mxu0
  %968 = vmatprep.mubr.bf16.mxu0 0
  %969 = vmatmul.mubr.bf16.gmra.mrb[0].mxu0 %v923
  %v970 = vpop.f32.mrb[0].mxu0
  %v971 = vadd.f32 0.0, %v970
  %v972 = vpop.f32.mrb[0].mxu0
  %v973 = vpop.f32.mrb[0].mxu0
  %v974 = vadd.f32 0.0, %v973
  %v975 = vpop.f32.mrb[0].mxu0
  %976 = vdwg.mxu0
  %v981 = vunpack.c.l.b16 %v856
  %v982 = vunpack.c.l.b16 %v857
  %v983 = vunpack.c.l.b16 %v858
  %v984 = vunpack.c.l.b16 %v859
  %v985 = vpack.c.b16 %v982, %v981
  %v986 = vpack.c.b16 %v984, %v983
  %v988 = vsel %vm353, %v985, 0
  %v991 = vsel %vm353, %v986, 0
  %v994 = vsel %vm481, %v860, 0
  %996 = vmatprep.subr.bf16.mxu0 0
  %997 = vmatpush1.bf16.msra.mxu0 %v994
  %998 = vmatprep.subr.bf16.mxu0 0
  %999 = vmatpush1.bf16.msra.mxu0 0
  %1000 = vmatprep.subr.bf16.mxu0 0
  %1001 = vmatpush1.bf16.msra.mxu0 0
  %1002 = vmatprep.subr.bf16.mxu0 0
  %1003 = vmatpush1.bf16.msra.mxu0 0
  %1004 = vmatprep.subr.bf16.mxu0 0
  %1005 = vmatpush1.bf16.msra.mxu0 0
  %1006 = vmatprep.subr.bf16.mxu0 0
  %1007 = vmatpush1.bf16.msra.mxu0 0
  %1008 = vmatprep.subr.bf16.mxu0 0
  %1009 = vmatpush1.bf16.msra.mxu0 0
  %1010 = vmatprep.subr.bf16.mxu0 0
  %1011 = vmatpush1.bf16.msra.mxu0 0
  %1012 = vmatprep.subr.bf16.mxu0 0
  %1013 = vmatpush1.bf16.msra.mxu0 0
  %1014 = vmatprep.subr.bf16.mxu0 0
  %1015 = vmatpush1.bf16.msra.mxu0 0
  %1016 = vmatprep.subr.bf16.mxu0 0
  %1017 = vmatpush1.bf16.msra.mxu0 0
  %1018 = vmatprep.subr.bf16.mxu0 0
  %1019 = vmatpush1.bf16.msra.mxu0 0
  %1020 = vmatprep.subr.bf16.mxu0 0
  %1021 = vmatpush1.bf16.msra.mxu0 0
  %1022 = vmatprep.subr.bf16.mxu0 0
  %1023 = vmatpush1.bf16.msra.mxu0 0
  %1024 = vmatprep.subr.bf16.mxu0 0
  %1025 = vmatpush1.bf16.msra.mxu0 0
  %1026 = vmatprep.subr.bf16.mxu0 0
  %1027 = vmatpush1.bf16.msra.mxu0 0
  %1028 = vmatprep.mubr.bf16.mxu0 0
  %1029 = vmatmul.mubr.bf16.gmra.mrb[0].mxu0 %v988
  %v1030 = vpop.f32.mrb[0].mxu0
  %v1031 = vadd.f32 %v963, %v1030
  %v1032 = vpop.f32.mrb[0].mxu0
  %v1033 = vpop.f32.mrb[0].mxu0
  %v1034 = vadd.f32 %v966, %v1033
  %v1035 = vpop.f32.mrb[0].mxu0
  %1036 = vmatprep.mubr.bf16.mxu0 0
  %1037 = vmatmul.mubr.bf16.gmra.mrb[0].mxu0 %v991
  %v1038 = vpop.f32.mrb[0].mxu0
  %v1039 = vadd.f32 %v971, %v1038
  %v1040 = vpop.f32.mrb[0].mxu0
  %v1041 = vpop.f32.mrb[0].mxu0
  %v1042 = vadd.f32 %v974, %v1041
  %v1043 = vpop.f32.mrb[0].mxu0
  %1044 = vdwg.mxu0
  %v1045 = vld [vmem:[#allocation2] sm:$0xe]
  %v1046 = vld [vmem:[#allocation2 + $0xc] sm:$0xe]
  %v1051 = vrot.slane %v1045, 5
  %v1052 = vrot.slane %v1051, 4
  %v1053 = vrot.slane %v857, 5
  %v1054 = vsel %vm256, %v1052, %v1053
  %v1055 = vrot.slane %v1053, 4
  %v1056 = vrot.slane %v861, 5
  %v1057 = vsel %vm256, %v1055, %v1056
  %v1058 = vrot.slane %v1046, 5
  %v1059 = vrot.slane %v1058, 4
  %v1060 = vrot.slane %v859, 5
  %v1061 = vsel %vm256, %v1059, %v1060
  %v1062 = vrot.slane %v1060, 4
  %v1063 = vrot.slane %v862, 5
  %v1064 = vsel %vm256, %v1062, %v1063
  %s1065 = scalar_lea.vmem %s7, 8
  %v1066 = vld [vmem:[%s1065] sm:$0xf]
  %v1067 = vunpack.c.l.b16 %v1054
  %v1068 = vunpack.c.l.b16 %v1057
  %v1069 = vunpack.c.l.b16 %v1061
  %v1070 = vunpack.c.l.b16 %v1064
  %v1071 = vpack.c.b16 %v1068, %v1067
  %v1072 = vpack.c.b16 %v1070, %v1069
  %v1074 = vsel %vm353, %v1071, 0
  %v1077 = vsel %vm353, %v1072, 0
  %v1080 = vsel %vm481, %v1066, 0
  %1082 = vmatprep.subr.bf16.mxu0 0
  %1083 = vmatpush1.bf16.msra.mxu0 %v1080
  %1084 = vmatprep.subr.bf16.mxu0 0
  %1085 = vmatpush1.bf16.msra.mxu0 0
  %1086 = vmatprep.subr.bf16.mxu0 0
  %1087 = vmatpush1.bf16.msra.mxu0 0
  %1088 = vmatprep.subr.bf16.mxu0 0
  %1089 = vmatpush1.bf16.msra.mxu0 0
  %1090 = vmatprep.subr.bf16.mxu0 0
  %1091 = vmatpush1.bf16.msra.mxu0 0
  %1092 = vmatprep.subr.bf16.mxu0 0
  %1093 = vmatpush1.bf16.msra.mxu0 0
  %1094 = vmatprep.subr.bf16.mxu0 0
  %1095 = vmatpush1.bf16.msra.mxu0 0
  %1096 = vmatprep.subr.bf16.mxu0 0
  %1097 = vmatpush1.bf16.msra.mxu0 0
  %1098 = vmatprep.subr.bf16.mxu0 0
  %1099 = vmatpush1.bf16.msra.mxu0 0
  %1100 = vmatprep.subr.bf16.mxu0 0
  %1101 = vmatpush1.bf16.msra.mxu0 0
  %1102 = vmatprep.subr.bf16.mxu0 0
  %1103 = vmatpush1.bf16.msra.mxu0 0
  %1104 = vmatprep.subr.bf16.mxu0 0
  %1105 = vmatpush1.bf16.msra.mxu0 0
  %1106 = vmatprep.subr.bf16.mxu0 0
  %1107 = vmatpush1.bf16.msra.mxu0 0
  %1108 = vmatprep.subr.bf16.mxu0 0
  %1109 = vmatpush1.bf16.msra.mxu0 0
  %1110 = vmatprep.subr.bf16.mxu0 0
  %1111 = vmatpush1.bf16.msra.mxu0 0
  %1112 = vmatprep.subr.bf16.mxu0 0
  %1113 = vmatpush1.bf16.msra.mxu0 0
  %1114 = vmatprep.mubr.bf16.mxu0 0
  %1115 = vmatmul.mubr.bf16.gmra.mrb[0].mxu0 %v1074
  %v1116 = vpop.f32.mrb[0].mxu0
  %v1117 = vadd.f32 0.0, %v1116
  %v1118 = vpop.f32.mrb[0].mxu0
  %v1119 = vpop.f32.mrb[0].mxu0
  %v1120 = vadd.f32 0.0, %v1119
  %v1121 = vpop.f32.mrb[0].mxu0
  %1122 = vmatprep.mubr.bf16.mxu0 0
  %1123 = vmatmul.mubr.bf16.gmra.mrb[0].mxu0 %v1077
  %v1124 = vpop.f32.mrb[0].mxu0
  %v1125 = vadd.f32 0.0, %v1124
  %v1126 = vpop.f32.mrb[0].mxu0
  %v1127 = vpop.f32.mrb[0].mxu0
  %v1128 = vadd.f32 0.0, %v1127
  %v1129 = vpop.f32.mrb[0].mxu0
  %1130 = vdwg.mxu0
  %v1131 = vadd.f32 %v1031, %v1117
  %v1132 = vadd.f32 %v1034, %v1120
  %v1133 = vadd.f32 %v1039, %v1125
  %v1134 = vadd.f32 %v1042, %v1128
  %v1136 = vlaneseq
  %v1137 = vshrl.u32 %v1136, 7
  %v1138 = vsub.s32 0, %v1137
  %v1139 = vrot.slane %v855, %v1138
  %v1141 = vadd.f32 %v1131, %v1139
  %v1142 = vadd.f32 %v1132, %v1139
  %v1143 = vadd.f32 %v1133, %v1139
  %v1144 = vadd.f32 %v1134, %v1139
  %v1145 = vld [vmem:[%s9] sm:$0x1]
  %v1146 = vld [vmem:[%s10] sm:$0x1]
  %v1147 = vsel %vm353, %v1141, 0.0
  %v1148 = vsel %vm353, %v1142, 0.0
  %v1149 = vadd.f32 %v1147, %v1148
  %v1150 = vrot.slane %v1149, 4
  %v1151 = vadd.f32 %v1149, %v1150
  %v1152 = vrot.slane %v1151, 2
  %v1153 = vadd.f32 %v1151, %v1152
  %v1154 = vrot.slane %v1153, 1
  %v1155 = vadd.f32 %v1153, %v1154
  %v1156 = vsel %vm353, %v1143, 0.0
  %v1157 = vsel %vm353, %v1144, 0.0
  %v1158 = vadd.f32 %v1156, %v1157
  %v1159 = vrot.slane %v1158, 4
  %v1160 = vadd.f32 %v1158, %v1159
  %v1161 = vrot.slane %v1160, 2
  %v1162 = vadd.f32 %v1160, %v1161
  %v1163 = vrot.slane %v1162, 1
  %v1164 = vadd.f32 %v1162, %v1163
  %v1165 = vmul.f32 %v1141, %v1141
  %v1166 = vmul.f32 %v1142, %v1142
  %v1167 = vmul.f32 %v1143, %v1143
  %v1168 = vmul.f32 %v1144, %v1144
  %v1169 = vsel %vm353, %v1165, 0.0
  %v1170 = vsel %vm353, %v1166, 0.0
  %v1171 = vadd.f32 %v1169, %v1170
  %v1172 = vrot.slane %v1171, 4
  %v1173 = vadd.f32 %v1171, %v1172
  %v1174 = vrot.slane %v1173, 2
  %v1175 = vadd.f32 %v1173, %v1174
  %v1176 = vrot.slane %v1175, 1
  %v1177 = vadd.f32 %v1175, %v1176
  %v1178 = vsel %vm353, %v1167, 0.0
  %v1179 = vsel %vm353, %v1168, 0.0
  %v1180 = vadd.f32 %v1178, %v1179
  %v1181 = vrot.slane %v1180, 4
  %v1182 = vadd.f32 %v1180, %v1181
  %v1183 = vrot.slane %v1182, 2
  %v1184 = vadd.f32 %v1182, %v1183
  %v1185 = vrot.slane %v1184, 1
  %v1186 = vadd.f32 %v1184, %v1185
  %v1189 = vsel %vm396, %v1164, %v1155
  %v1193 = vsel %vm401, %v1186, %v1177
  %v1195 = vsel %vm127, %v1189, %v1193
  %v1197 = vsel %vm353, %v1195, 0
  %1199 = vmatprep.subr.mxu0 0.0
  %1200 = vmatpush1.msra.mxu0 %v51
  %1201 = vmatprep.subr.mxu0 0.0
  %1202 = vmatpush1.msra.mxu0 0.0
  %1203 = vmatprep.subr.mxu0 0.0
  %1204 = vmatpush1.msra.mxu0 0.0
  %1205 = vmatprep.subr.mxu0 0.0
  %1206 = vmatpush1.msra.mxu0 0.0
  %1207 = vmatprep.subr.mxu0 0.0
  %1208 = vmatpush1.msra.mxu0 0.0
  %1209 = vmatprep.subr.mxu0 0.0
  %1210 = vmatpush1.msra.mxu0 0.0
  %1211 = vmatprep.subr.mxu0 0.0
  %1212 = vmatpush1.msra.mxu0 0.0
  %1213 = vmatprep.subr.mxu0 0.0
  %1214 = vmatpush1.msra.mxu0 0.0
  %1215 = vmatprep.subr.mxu0 0.0
  %1216 = vmatpush1.msra.mxu0 0.0
  %1217 = vmatprep.subr.mxu0 0.0
  %1218 = vmatpush1.msra.mxu0 0.0
  %1219 = vmatprep.subr.mxu0 0.0
  %1220 = vmatpush1.msra.mxu0 0.0
  %1221 = vmatprep.subr.mxu0 0.0
  %1222 = vmatpush1.msra.mxu0 0.0
  %1223 = vmatprep.subr.mxu0 0.0
  %1224 = vmatpush1.msra.mxu0 0.0
  %1225 = vmatprep.subr.mxu0 0.0
  %1226 = vmatpush1.msra.mxu0 0.0
  %1227 = vmatprep.subr.mxu0 0.0
  %1228 = vmatpush1.msra.mxu0 0.0
  %1229 = vmatprep.subr.mxu0 0.0
  %1230 = vmatpush1.msra.mxu0 0.0
  %1231 = vmatprep.subr.mxu0 0.0
  %1232 = vmatpush1.msra.mxu0 0.0
  %1233 = vmatprep.subr.mxu0 0.0
  %1234 = vmatpush1.msra.mxu0 0.0
  %1235 = vmatprep.subr.mxu0 0.0
  %1236 = vmatpush1.msra.mxu0 0.0
  %1237 = vmatprep.subr.mxu0 0.0
  %1238 = vmatpush1.msra.mxu0 0.0
  %1239 = vmatprep.subr.mxu0 0.0
  %1240 = vmatpush1.msra.mxu0 0.0
  %1241 = vmatprep.subr.mxu0 0.0
  %1242 = vmatpush1.msra.mxu0 0.0
  %1243 = vmatprep.subr.mxu0 0.0
  %1244 = vmatpush1.msra.mxu0 0.0
  %1245 = vmatprep.subr.mxu0 0.0
  %1246 = vmatpush1.msra.mxu0 0.0
  %1247 = vmatprep.subr.mxu0 0.0
  %1248 = vmatpush1.msra.mxu0 0.0
  %1249 = vmatprep.subr.mxu0 0.0
  %1250 = vmatpush1.msra.mxu0 0.0
  %1251 = vmatprep.subr.mxu0 0.0
  %1252 = vmatpush1.msra.mxu0 0.0
  %1253 = vmatprep.subr.mxu0 0.0
  %1254 = vmatpush1.msra.mxu0 0.0
  %1255 = vmatprep.subr.mxu0 0.0
  %1256 = vmatpush1.msra.mxu0 0.0
  %1257 = vmatprep.subr.mxu0 0.0
  %1258 = vmatpush1.msra.mxu0 0.0
  %1259 = vmatprep.subr.mxu0 0.0
  %1260 = vmatpush1.msra.mxu0 0.0
  %1261 = vmatprep.subr.mxu0 0.0
  %1262 = vmatpush1.msra.mxu0 0.0
  %1263 = vmatprep.mubr.f32.mxu0 0.0
  %1264 = vmatmul.mubr.f32.gmra.mrb[0].mxu0 %v1197
  %v1265 = vpop.f32.mrb[0].mxu0
  %v1266 = vadd.f32 0.0, %v1265
  %v1267 = vpop.f32.mrb[0].mxu0
  %1268 = vdwg.mxu0
  %v1270 = vsel %vm120, %v1266, 0
  %1272 = vmatprep.subr.mxu0 0.0
  %1273 = vmatpush1.msra.mxu0 %v483
  %1274 = vmatprep.subr.mxu0 0.0
  %1275 = vmatpush1.msra.mxu0 0.0
  %1276 = vmatprep.subr.mxu0 0.0
  %1277 = vmatpush1.msra.mxu0 0.0
  %1278 = vmatprep.subr.mxu0 0.0
  %1279 = vmatpush1.msra.mxu0 0.0
  %1280 = vmatprep.subr.mxu0 0.0
  %1281 = vmatpush1.msra.mxu0 0.0
  %1282 = vmatprep.subr.mxu0 0.0
  %1283 = vmatpush1.msra.mxu0 0.0
  %1284 = vmatprep.subr.mxu0 0.0
  %1285 = vmatpush1.msra.mxu0 0.0
  %1286 = vmatprep.subr.mxu0 0.0
  %1287 = vmatpush1.msra.mxu0 0.0
  %1288 = vmatprep.subr.mxu0 0.0
  %1289 = vmatpush1.msra.mxu0 0.0
  %1290 = vmatprep.subr.mxu0 0.0
  %1291 = vmatpush1.msra.mxu0 0.0
  %1292 = vmatprep.subr.mxu0 0.0
  %1293 = vmatpush1.msra.mxu0 0.0
  %1294 = vmatprep.subr.mxu0 0.0
  %1295 = vmatpush1.msra.mxu0 0.0
  %1296 = vmatprep.subr.mxu0 0.0
  %1297 = vmatpush1.msra.mxu0 0.0
  %1298 = vmatprep.subr.mxu0 0.0
  %1299 = vmatpush1.msra.mxu0 0.0
  %1300 = vmatprep.subr.mxu0 0.0
  %1301 = vmatpush1.msra.mxu0 0.0
  %1302 = vmatprep.subr.mxu0 0.0
  %1303 = vmatpush1.msra.mxu0 0.0
  %1304 = vmatprep.subr.mxu0 0.0
  %1305 = vmatpush1.msra.mxu0 0.0
  %1306 = vmatprep.subr.mxu0 0.0
  %1307 = vmatpush1.msra.mxu0 0.0
  %1308 = vmatprep.subr.mxu0 0.0
  %1309 = vmatpush1.msra.mxu0 0.0
  %1310 = vmatprep.subr.mxu0 0.0
  %1311 = vmatpush1.msra.mxu0 0.0
  %1312 = vmatprep.subr.mxu0 0.0
  %1313 = vmatpush1.msra.mxu0 0.0
  %1314 = vmatprep.subr.mxu0 0.0
  %1315 = vmatpush1.msra.mxu0 0.0
  %1316 = vmatprep.subr.mxu0 0.0
  %1317 = vmatpush1.msra.mxu0 0.0
  %1318 = vmatprep.subr.mxu0 0.0
  %1319 = vmatpush1.msra.mxu0 0.0
  %1320 = vmatprep.subr.mxu0 0.0
  %1321 = vmatpush1.msra.mxu0 0.0
  %1322 = vmatprep.subr.mxu0 0.0
  %1323 = vmatpush1.msra.mxu0 0.0
  %1324 = vmatprep.subr.mxu0 0.0
  %1325 = vmatpush1.msra.mxu0 0.0
  %1326 = vmatprep.subr.mxu0 0.0
  %1327 = vmatpush1.msra.mxu0 0.0
  %1328 = vmatprep.subr.mxu0 0.0
  %1329 = vmatpush1.msra.mxu0 0.0
  %1330 = vmatprep.subr.mxu0 0.0
  %1331 = vmatpush1.msra.mxu0 0.0
  %1332 = vmatprep.subr.mxu0 0.0
  %1333 = vmatpush1.msra.mxu0 0.0
  %1334 = vmatprep.subr.mxu0 0.0
  %1335 = vmatpush1.msra.mxu0 0.0
  %1336 = vmatprep.mubr.f32.mxu0 0.0
  %1337 = vmatmul.mubr.f32.gmra.mrb[0].mxu0 %v1270
  %v1338 = vpop.f32.mrb[0].mxu0
  %v1339 = vadd.f32 0.0, %v1338
  %v1340 = vpop.f32.mrb[0].mxu0
  %1341 = vdwg.mxu0
  %v1342 = vmul.f32 %v1339, 0.03125
  %v1343 = vmul.f32 %v1342, %v1342
  %v1345 = vrot.slane %v1343, 6
  %v1347 = vsub.f32 %v1342, %v1345
  %v1348 = vadd.f32 %v1347, 1e-05
  %v1349 = vrsqrt.pop %v1348
  %v1352 = vunpack.c.l.s4 1966171168
  %v1353 = vunpack.c.0.s8 %v1352
  %v1354 = vlaneseq
  %v1355 = vshrl.u32 %v1354, 7
  %v1356 = vsub.s32 %v1353, %v1355
  %v1357 = vrot.slane %v1342, %v1356
  %v1358 = vcombine.high %v1357, %v1357
  %v1360 = vunpack.c.l.s4 1966171168
  %v1361 = vunpack.c.0.s8 %v1360
  %v1362 = vlaneseq
  %v1363 = vshrl.u32 %v1362, 7
  %v1364 = vsub.s32 %v1361, %v1363
  %v1365 = vrot.slane %v1357, %v1364
  %v1367 = vunpack.c.l.s4 1966171168
  %v1368 = vunpack.c.0.s8 %v1367
  %v1369 = vlaneseq
  %v1370 = vshrl.u32 %v1369, 7
  %v1371 = vsub.s32 %v1368, %v1370
  %v1372 = vrot.slane %v1358, %v1371
  %v1373 = vlaneseq
  %v1374 = vshrl.u32 %v1373, 7
  %v1375 = vsub.s32 0, %v1374
  %v1376 = vrot.slane %v1365, %v1375
  %v1377 = vlaneseq
  %v1378 = vshrl.u32 %v1377, 7
  %v1379 = vsub.s32 0, %v1378
  %v1380 = vrot.slane %v1372, %v1379
  %v1383 = vsub.f32 %v1141, %v1376
  %v1384 = vsub.f32 %v1142, %v1376
  %v1385 = vsub.f32 %v1143, %v1380
  %v1386 = vsub.f32 %v1144, %v1380
  %v1389 = vunpack.c.l.s4 1966171168
  %v1390 = vunpack.c.0.s8 %v1389
  %v1391 = vlaneseq
  %v1392 = vshrl.u32 %v1391, 7
  %v1393 = vsub.s32 %v1390, %v1392
  %v1394 = vrot.slane %v1349, %v1393
  %v1395 = vcombine.high %v1394, %v1394
  %v1397 = vunpack.c.l.s4 1966171168
  %v1398 = vunpack.c.0.s8 %v1397
  %v1399 = vlaneseq
  %v1400 = vshrl.u32 %v1399, 7
  %v1401 = vsub.s32 %v1398, %v1400
  %v1402 = vrot.slane %v1394, %v1401
  %v1404 = vunpack.c.l.s4 1966171168
  %v1405 = vunpack.c.0.s8 %v1404
  %v1406 = vlaneseq
  %v1407 = vshrl.u32 %v1406, 7
  %v1408 = vsub.s32 %v1405, %v1407
  %v1409 = vrot.slane %v1395, %v1408
  %v1410 = vcombine.high %v1402, %v1402
  %v1411 = vcombine.high %v1409, %v1409
  %v1412 = vlaneseq
  %v1413 = vshrl.u32 %v1412, 7
  %v1414 = vsub.s32 0, %v1413
  %v1415 = vrot.slane %v1410, %v1414
  %v1416 = vlaneseq
  %v1417 = vshrl.u32 %v1416, 7
  %v1418 = vsub.s32 0, %v1417
  %v1419 = vrot.slane %v1411, %v1418
  %v1422 = vmul.f32 %v1383, %v1415
  %v1423 = vmul.f32 %v1384, %v1415
  %v1424 = vmul.f32 %v1385, %v1419
  %v1425 = vmul.f32 %v1386, %v1419
  %v1427 = vlaneseq
  %v1428 = vshrl.u32 %v1427, 7
  %v1429 = vsub.s32 0, %v1428
  %v1430 = vrot.slane %v1145, %v1429
  %v1432 = vmul.f32 %v1422, %v1430
  %v1433 = vmul.f32 %v1423, %v1430
  %v1434 = vmul.f32 %v1424, %v1430
  %v1435 = vmul.f32 %v1425, %v1430
  %v1437 = vlaneseq
  %v1438 = vshrl.u32 %v1437, 7
  %v1439 = vsub.s32 0, %v1438
  %v1440 = vrot.slane %v1146, %v1439
  %v1442 = vadd.f32 %v1432, %v1440
  %v1443 = vadd.f32 %v1433, %v1440
  %v1444 = vadd.f32 %v1434, %v1440
  %v1445 = vadd.f32 %v1435, %v1440
  %v1446 = vand.u32 2147483647, %v1442
  %v1447 = vand.u32 2147483647, %v1443
  %v1448 = vand.u32 2147483647, %v1444
  %v1449 = vand.u32 2147483647, %v1445
  %v1450 = vsub.f32 0.0, %v1446
  %v1451 = vsub.f32 0.0, %v1447
  %v1452 = vsub.f32 0.0, %v1448
  %v1453 = vsub.f32 0.0, %v1449
  %v1454 = vmul.f32 %v1450, 1.442695
  %v1455 = vpow.pop %v1454
  %v1456 = vmul.f32 %v1451, 1.442695
  %v1457 = vpow.pop %v1456
  %v1458 = vmul.f32 %v1452, 1.442695
  %v1459 = vpow.pop %v1458
  %v1460 = vmul.f32 %v1453, 1.442695
  %v1461 = vpow.pop %v1460
  %v1462 = vmul.f32 %v1455, %v1455
  %v1463 = vmul.f32 %v1457, %v1457
  %v1464 = vmul.f32 %v1459, %v1459
  %v1465 = vmul.f32 %v1461, %v1461
  %vm1466 = vcmp.ge.f32.partialorder %v1442, 0.0
  %vm1467 = vcmp.ge.f32.partialorder %v1443, 0.0
  %vm1468 = vcmp.ge.f32.partialorder %v1444, 0.0
  %vm1469 = vcmp.ge.f32.partialorder %v1445, 0.0
  %v1470 = vmul.f32 %v1455, 2.0
  %v1471 = vmul.f32 %v1457, 2.0
  %v1472 = vmul.f32 %v1459, 2.0
  %v1473 = vmul.f32 %v1461, 2.0
  %v1474 = vadd.f32 %v1470, 1.0
  %v1475 = vadd.f32 %v1471, 1.0
  %v1476 = vadd.f32 %v1472, 1.0
  %v1477 = vadd.f32 %v1473, 1.0
  %v1478 = vadd.f32 %v1470, %v1462
  %v1479 = vadd.f32 %v1471, %v1463
  %v1480 = vadd.f32 %v1472, %v1464
  %v1481 = vadd.f32 %v1473, %v1465
  %v1482 = vsel %vm1466, %v1474, %v1478
  %v1483 = vsel %vm1467, %v1475, %v1479
  %v1484 = vsel %vm1468, %v1476, %v1480
  %v1485 = vsel %vm1469, %v1477, %v1481
  %v1486 = vmul.f32 %v1462, 2.0
  %v1487 = vmul.f32 %v1463, 2.0
  %v1488 = vmul.f32 %v1464, 2.0
  %v1489 = vmul.f32 %v1465, 2.0
  %v1490 = vadd.f32 %v1474, %v1486
  %v1491 = vadd.f32 %v1475, %v1487
  %v1492 = vadd.f32 %v1476, %v1488
  %v1493 = vadd.f32 %v1477, %v1489
  %v1494 = vadd.f32 %v1470, 2.0
  %v1495 = vadd.f32 %v1471, 2.0
  %v1496 = vadd.f32 %v1472, 2.0
  %v1497 = vadd.f32 %v1473, 2.0
  %v1498 = vadd.f32 %v1494, %v1462
  %v1499 = vadd.f32 %v1495, %v1463
  %v1500 = vadd.f32 %v1496, %v1464
  %v1501 = vadd.f32 %v1497, %v1465
  %v1502 = vsel %vm1466, %v1490, %v1498
  %v1503 = vsel %vm1467, %v1491, %v1499
  %v1504 = vsel %vm1468, %v1492, %v1500
  %v1505 = vsel %vm1469, %v1493, %v1501
  %v1506 = vmul.f32 %v1442, %v1482
  %v1507 = vmul.f32 %v1443, %v1483
  %v1508 = vmul.f32 %v1444, %v1484
  %v1509 = vmul.f32 %v1445, %v1485
  %v1510 = vrcp.pop %v1502
  %v1511 = vmul.f32 %v1506, %v1510
  %v1512 = vrcp.pop %v1503
  %v1513 = vmul.f32 %v1507, %v1512
  %v1514 = vrcp.pop %v1504
  %v1515 = vmul.f32 %v1508, %v1514
  %v1516 = vrcp.pop %v1505
  %v1517 = vmul.f32 %v1509, %v1516
  %v1518 = vld [vmem:[%s0] sm:$0xf]
  %v1519 = vld [vmem:[%s0 + $0x4] sm:$0xf]
  %v1520 = vld [vmem:[%s0 + $0x8] sm:$0x1]
  %v1521 = vld [vmem:[%s0 + $0xc] sm:$0xf]
  %v1522 = vld [vmem:[%s0 + $0x10] sm:$0xf]
  %v1523 = vld [vmem:[%s0 + $0x14] sm:$0x1]
  %v1525 = vshrl.u32 %v1518, 16
  %v1527 = vrot.slane %v1525, 4
  %v1528 = vshll.u32 %v1518, 16
  %v1530 = vrot.slane %v1528, 5
  %v1531 = vor.u32 %v1527, %v1530
  %v1532 = vrot.slane %v1531, 4
  %v1534 = vshll.u32 %v1519, 16
  %v1536 = vrot.slane %v1534, 5
  %v1537 = vsel %vm63, %v1532, %v1536
  %v1538 = vshrl.u32 %v1519, 16
  %v1540 = vrot.slane %v1538, 4
  %v1541 = vor.u32 %v1540, %v1536
  %v1542 = vrot.slane %v1541, 4
  %v1544 = vshll.u32 %v1520, 16
  %v1546 = vrot.slane %v1544, 5
  %v1547 = vsel %vm63, %v1542, %v1546
  %v1549 = vshrl.u32 %v1521, 16
  %v1551 = vrot.slane %v1549, 4
  %v1552 = vshll.u32 %v1521, 16
  %v1554 = vrot.slane %v1552, 5
  %v1555 = vor.u32 %v1551, %v1554
  %v1556 = vrot.slane %v1555, 4
  %v1558 = vshll.u32 %v1522, 16
  %v1560 = vrot.slane %v1558, 5
  %v1561 = vsel %vm63, %v1556, %v1560
  %v1562 = vshrl.u32 %v1522, 16
  %v1564 = vrot.slane %v1562, 4
  %v1565 = vor.u32 %v1564, %v1560
  %v1566 = vrot.slane %v1565, 4
  %v1568 = vshll.u32 %v1523, 16
  %v1570 = vrot.slane %v1568, 5
  %v1571 = vsel %vm63, %v1566, %v1570
  %v1572 = vld [vmem:[%s13] sm:$0x3]
  %v1573 = vld [vmem:[%s14] sm:$0x1]
  %v1575 = vlaneseq
  %v1576 = vshrl.u32 %v1575, 7
  %v1577 = vsub.s32 0, %v1576
  %v1578 = vrot.slane %v1573, %v1577
  %v1580 = vunpack.c.l.b16 %v1537
  %v1581 = vunpack.c.l.b16 %v1547
  %v1582 = vunpack.c.l.b16 %v1561
  %v1583 = vunpack.c.l.b16 %v1571
  %v1584 = vpack.c.b16 %v1581, %v1580
  %v1585 = vpack.c.b16 %v1583, %v1582
  %v1587 = vsel %vm120, %v1584, 0
  %v1590 = vsel %vm120, %v1585, 0
  %v1593 = vsel %vm127, %v1572, 0
  %1595 = vmatprep.subr.bf16.mxu0 0
  %1596 = vmatpush1.bf16.msra.mxu0 %v1593
  %1597 = vmatprep.subr.bf16.mxu0 0
  %1598 = vmatpush1.bf16.msra.mxu0 0
  %1599 = vmatprep.subr.bf16.mxu0 0
  %1600 = vmatpush1.bf16.msra.mxu0 0
  %1601 = vmatprep.subr.bf16.mxu0 0
  %1602 = vmatpush1.bf16.msra.mxu0 0
  %1603 = vmatprep.subr.bf16.mxu0 0
  %1604 = vmatpush1.bf16.msra.mxu0 0
  %1605 = vmatprep.subr.bf16.mxu0 0
  %1606 = vmatpush1.bf16.msra.mxu0 0
  %1607 = vmatprep.subr.bf16.mxu0 0
  %1608 = vmatpush1.bf16.msra.mxu0 0
  %1609 = vmatprep.subr.bf16.mxu0 0
  %1610 = vmatpush1.bf16.msra.mxu0 0
  %1611 = vmatprep.subr.bf16.mxu0 0
  %1612 = vmatpush1.bf16.msra.mxu0 0
  %1613 = vmatprep.subr.bf16.mxu0 0
  %1614 = vmatpush1.bf16.msra.mxu0 0
  %1615 = vmatprep.subr.bf16.mxu0 0
  %1616 = vmatpush1.bf16.msra.mxu0 0
  %1617 = vmatprep.subr.bf16.mxu0 0
  %1618 = vmatpush1.bf16.msra.mxu0 0
  %1619 = vmatprep.subr.bf16.mxu0 0
  %1620 = vmatpush1.bf16.msra.mxu0 0
  %1621 = vmatprep.subr.bf16.mxu0 0
  %1622 = vmatpush1.bf16.msra.mxu0 0
  %1623 = vmatprep.subr.bf16.mxu0 0
  %1624 = vmatpush1.bf16.msra.mxu0 0
  %1625 = vmatprep.subr.bf16.mxu0 0
  %1626 = vmatpush1.bf16.msra.mxu0 0
  %1627 = vmatprep.mubr.bf16.mxu0 0
  %1628 = vmatmul.mubr.bf16.gmra.mrb[0].mxu0 %v1587
  %v1629 = vpop.f32.mrb[0].mxu0
  %v1630 = vadd.f32 %v1578, %v1629
  %v1631 = vpop.f32.mrb[0].mxu0
  %v1632 = vpop.f32.mrb[0].mxu0
  %v1633 = vadd.f32 %v1578, %v1632
  %v1634 = vpop.f32.mrb[0].mxu0
  %1635 = vmatprep.mubr.bf16.mxu0 0
  %1636 = vmatmul.mubr.bf16.gmra.mrb[0].mxu0 %v1590
  %v1637 = vpop.f32.mrb[0].mxu0
  %v1638 = vadd.f32 %v1578, %v1637
  %v1639 = vpop.f32.mrb[0].mxu0
  %v1640 = vpop.f32.mrb[0].mxu0
  %v1641 = vadd.f32 %v1578, %v1640
  %v1642 = vpop.f32.mrb[0].mxu0
  %1643 = vdwg.mxu0
  %v1644 = vadd.f32 %v1511, %v1630
  %v1645 = vadd.f32 %v1513, %v1633
  %v1646 = vadd.f32 %v1515, %v1638
  %v1647 = vadd.f32 %v1517, %v1641
  %1648 = vst.msk [vmem:[%s15] sm:$0xff] %vm353, %v1644
  %1649 = vst.msk [vmem:[%s15 + $0x8] sm:$0xff] %vm353, %v1645
  %1650 = vst.msk [vmem:[%s15 + $0x10] sm:$0xff] %vm353, %v1646
  %1651 = vst.msk [vmem:[%s15 + $0x18] sm:$0xff] %vm353, %v1647
  // Predicated region
  $region62: #{tpu_custom_call.1} parent=0 // pred_check
    _
  $region63: #{tpu_custom_call.1} parent=0 // pred_check_branch
    %1653 = sbr.rel (0) target = $region65
  $region64: #{tpu_custom_call.1} parent=0 // pred_region
    _
  $region65: #{tpu_custom_call.1} parent=0 // pred_fallthru
    _
  // Predicated region
  $region66: #{tpu_custom_call.1} parent=0 // pred_check
    _
  $region67: #{tpu_custom_call.1} parent=0 // pred_check_branch
    %1655 = sbr.rel (0) target = $region69
  $region68: #{tpu_custom_call.1} parent=0 // pred_region
    _
  $region69: #{tpu_custom_call.1} parent=0 // pred_fallthru
    _

</llo_original>
